<compile_context>
chip_gen: v7x
topology: tpu7x:2x2x1
jax: 0.10.0
libtpu: 0.0.40
codegen_flags: <defaults>
</compile_context>

<pallas_src>
import functools
import math

import jax
import jax.numpy as jnp
from jax.experimental import pallas as pl
from jax.experimental.pallas import tpu as pltpu

EPS = 1e-5


def _layernorm(x, gamma, beta):
    mu = jnp.mean(x, axis=-1, keepdims=True)
    var = jnp.mean((x - mu) ** 2, axis=-1, keepdims=True)
    return (x - mu) * jax.lax.rsqrt(var + EPS) * gamma + beta


def residual_attention_kernel(
    x_ref,
    wqkv_ref, bqkv_ref, wo_ref, bo_ref,
    w1_ref, b1_ref, w2_ref, b2_ref,
    g1_ref, be1_ref, g2_ref, be2_ref,
    o_ref,
    *, nhead,
):
    TB, S, D = x_ref.shape
    hd = D // nhead

    x = x_ref[...].astype(jnp.float32)                      # (TB, S, D)

    # ---- ln_1 (f32) ----
    x1 = _layernorm(x, g1_ref[...], be1_ref[...])

    # ---- fused QKV projection: one MXU op, M = TB*S ----
    x1_flat = x1.reshape(TB * S, D).astype(jnp.bfloat16)
    qkv = jnp.dot(x1_flat, wqkv_ref[...],
                  preferred_element_type=jnp.float32) + bqkv_ref[...]
    qkv = qkv.reshape(TB, S, 3 * D)                         # (TB, S, 3D)

    # ---- multi-head self attention (scale already folded into Q weights) ----
    # TODO(synk): attn_mask support not implemented (module default is None).
    head_outs = []
    for h in range(nhead):
        qh = qkv[:, :, h * hd:(h + 1) * hd]                 # (TB, S, hd)
        kh = qkv[:, :, D + h * hd:D + (h + 1) * hd]
        vh = qkv[:, :, 2 * D + h * hd:2 * D + (h + 1) * hd]
        s = jnp.einsum('bqd,bkd->bqk',
                       qh.astype(jnp.bfloat16), kh.astype(jnp.bfloat16),
                       preferred_element_type=jnp.float32)   # (TB, S, S)
        s = s - jnp.max(s, axis=-1, keepdims=True)
        e = jnp.exp(s)
        p = e * pl.reciprocal(jnp.sum(e, axis=-1, keepdims=True), approx=True)
        head_outs.append(
            jnp.einsum('bqk,bkd->bqd',
                       p.astype(jnp.bfloat16), vh.astype(jnp.bfloat16),
                       preferred_element_type=jnp.float32))  # (TB, S, hd)
    ctx = jnp.concatenate(head_outs, axis=-1)               # (TB, S, D)

    attn = jnp.dot(ctx.reshape(TB * S, D).astype(jnp.bfloat16), wo_ref[...],
                   preferred_element_type=jnp.float32) + bo_ref[...]
    x = x + attn.reshape(TB, S, D)                          # residual 1

    # ---- ln_2 + MLP with QuickGELU ----
    x2 = _layernorm(x, g2_ref[...], be2_ref[...])
    h1 = jnp.dot(x2.reshape(TB * S, D).astype(jnp.bfloat16), w1_ref[...],
                 preferred_element_type=jnp.float32) + b1_ref[...]
    h1 = h1 * (1.0 / (1.0 + jnp.exp(-1.702 * h1)))          # QuickGELU (f32)
    ff = jnp.dot(h1.astype(jnp.bfloat16), w2_ref[...],
                 preferred_element_type=jnp.float32) + b2_ref[...]
    x = x + ff.reshape(TB, S, D)                            # residual 2

    o_ref[...] = x.astype(o_ref.dtype)


def _choose_tb(B, S):
    """Batch-rows per grid step: make the matmul M dim big, keep grid >= 2 if possible."""
    divs = [d for d in range(1, B + 1) if B % d == 0]
    good = [d for d in divs if d * S >= 128 and B // d >= 2 and d * S <= 2048]
    if good:
        return min(good)
    small = [d for d in divs if d * S <= 2048]
    return max(small) if small else 1


def _prep_kernel_params(p, nhead):
    """Fuse QKV, fold 1/sqrt(hd) into Q, transpose to x@W layout, cast to bf16."""
    D = p["out_w"].shape[0]
    dff = p["fc_w"].shape[0]
    hd = D // nhead
    scale = 1.0 / math.sqrt(hd)
    bf16 = jnp.bfloat16
    wq = p["in_proj_w"][:D].T * scale
    wk = p["in_proj_w"][D:2 * D].T
    wv = p["in_proj_w"][2 * D:].T
    bq = p["in_proj_b"][:D] * scale
    bk = p["in_proj_b"][D:2 * D]
    bv = p["in_proj_b"][2 * D:]
    return {
        "wqkv": jnp.concatenate([wq, wk, wv], axis=1).astype(bf16),        # (D, 3D)
        "bqkv": jnp.concatenate([bq, bk, bv]).reshape(1, 3 * D).astype(jnp.float32),
        "wo": p["out_w"].T.astype(bf16),                                   # (D, D)
        "bo": p["out_b"].reshape(1, D).astype(jnp.float32),
        "w1": p["fc_w"].T.astype(bf16),                                    # (D, dff)
        "b1": p["fc_b"].reshape(1, dff).astype(jnp.float32),
        "w2": p["proj_w"].T.astype(bf16),                                  # (dff, D)
        "b2": p["proj_b"].reshape(1, D).astype(jnp.float32),
        "g1": p["ln1_g"].reshape(1, D).astype(jnp.float32),
        "be1": p["ln1_b"].reshape(1, D).astype(jnp.float32),
        "g2": p["ln2_g"].reshape(1, D).astype(jnp.float32),
        "be2": p["ln2_b"].reshape(1, D).astype(jnp.float32),
    }


def residual_attention_block(x, params, *, nhead):
    """x: (S, B, D) float32 (torch MultiheadAttention layout). Returns (S, B, D)."""
    S, B, D = x.shape
    kp = _prep_kernel_params(params, nhead)
    dff = kp["w1"].shape[1]
    TB = _choose_tb(B, S)

    xb = jnp.transpose(x, (1, 0, 2))                        # (B, S, D)

    full = lambda shape: pl.BlockSpec(shape, lambda b: (0,) * len(shape))
    kernel = functools.partial(residual_attention_kernel, nhead=nhead)

    out = pl.pallas_call(
        kernel,
        out_shape=jax.ShapeDtypeStruct((B, S, D), x.dtype),
        grid_spec=pltpu.PrefetchScalarGridSpec(
            num_scalar_prefetch=0,
            grid=(B // TB,),
            in_specs=[
                pl.BlockSpec((TB, S, D), lambda b: (b, 0, 0)),   # x block
                full((D, 3 * D)), full((1, 3 * D)),              # wqkv, bqkv
                full((D, D)), full((1, D)),                      # wo, bo
                full((D, dff)), full((1, dff)),                  # w1, b1
                full((dff, D)), full((1, D)),                    # w2, b2
                full((1, D)), full((1, D)),                      # ln1 gamma/beta
                full((1, D)), full((1, D)),                      # ln2 gamma/beta
            ],
            out_specs=pl.BlockSpec((TB, S, D), lambda b: (b, 0, 0)),
        ),
        compiler_params=pltpu.CompilerParams(
            dimension_semantics=("parallel",),
            vmem_limit_bytes=32 * 1024 * 1024,
        ),
    )(xb, kp["wqkv"], kp["bqkv"], kp["wo"], kp["bo"],
      kp["w1"], kp["b1"], kp["w2"], kp["b2"],
      kp["g1"], kp["be1"], kp["g2"], kp["be2"])
    return jnp.transpose(out, (1, 0, 2))


def make_params(key, d_model, nhead):
    """PyTorch-layout parameters (W is (out, in)) for the block."""
    dff = 4 * d_model
    ks = jax.random.split(key, 10)
    s = 0.05
    return {
        "in_proj_w": jax.random.normal(ks[0], (3 * d_model, d_model), jnp.float32) * s,
        "in_proj_b": jax.random.normal(ks[1], (3 * d_model,), jnp.float32) * s,
        "out_w": jax.random.normal(ks[2], (d_model, d_model), jnp.float32) * s,
        "out_b": jax.random.normal(ks[3], (d_model,), jnp.float32) * s,
        "fc_w": jax.random.normal(ks[4], (dff, d_model), jnp.float32) * s,
        "fc_b": jax.random.normal(ks[5], (dff,), jnp.float32) * s,
        "proj_w": jax.random.normal(ks[6], (d_model, dff), jnp.float32) * s,
        "proj_b": jax.random.normal(ks[7], (d_model,), jnp.float32) * s,
        "ln1_g": 1.0 + 0.1 * jax.random.normal(ks[8], (d_model,), jnp.float32),
        "ln1_b": 0.1 * jax.random.normal(ks[9], (d_model,), jnp.float32),
        "ln2_g": jnp.ones((d_model,), jnp.float32),
        "ln2_b": jnp.zeros((d_model,), jnp.float32),
    }


def reference(x, params, *, nhead):
    """Plain-JAX f32 replica of ResidualAttentionBlock.forward for checking."""
    S, B, D = x.shape
    hd = D // nhead

    def ln(y, g, b):
        mu = y.mean(-1, keepdims=True)
        var = ((y - mu) ** 2).mean(-1, keepdims=True)
        return (y - mu) / jnp.sqrt(var + EPS) * g + b

    # attention branch (pre-norm)
    x1 = ln(x, params["ln1_g"], params["ln1_b"])
    qkv = jnp.einsum("sbd,ed->sbe", x1, params["in_proj_w"]) + params["in_proj_b"]
    q, k, v = qkv[..., :D], qkv[..., D:2 * D], qkv[..., 2 * D:]
    q = q.reshape(S, B, nhead, hd).transpose(1, 2, 0, 3) / math.sqrt(hd)
    k = k.reshape(S, B, nhead, hd).transpose(1, 2, 0, 3)
    v = v.reshape(S, B, nhead, hd).transpose(1, 2, 0, 3)
    att = jax.nn.softmax(jnp.einsum("bhqd,bhkd->bhqk", q, k), axis=-1)
    o = jnp.einsum("bhqk,bhkd->bhqd", att, v).transpose(2, 0, 1, 3).reshape(S, B, D)
    o = jnp.einsum("sbd,ed->sbe", o, params["out_w"]) + params["out_b"]
    x = x + o

    # mlp branch (pre-norm, QuickGELU)
    x2 = ln(x, params["ln2_g"], params["ln2_b"])
    h = jnp.einsum("sbd,fd->sbf", x2, params["fc_w"]) + params["fc_b"]
    h = h * jax.nn.sigmoid(1.702 * h)
    m = jnp.einsum("sbf,df->sbd", h, params["proj_w"]) + params["proj_b"]
    return x + m


if __name__ == "__main__":
    S, B, D, NHEAD = 8, 2, 32, 4
    key = jax.random.PRNGKey(0)
    kx, kp = jax.random.split(key)
    x = jax.random.normal(kx, (S, B, D), jnp.float32)
    params = make_params(kp, D, NHEAD)

    out = residual_attention_block(x, params, nhead=NHEAD)
    out = jax.block_until_ready(out)

    ref = reference(x, params, nhead=NHEAD)
    assert out.shape == (S, B, D)
    max_err = float(jnp.max(jnp.abs(out - ref)))
    assert jnp.allclose(out, ref, atol=2e-2, rtol=2e-2), max_err
    print("KERNEL_OK")
</pallas_src>

<mosaic_0001>
module attributes {stable_mosaic.version = 11 : i64} {
  func.func @residual_attention_kernel(%arg0: i32, %arg1: memref<2x8x32xf32, #tpu.memory_space<vmem>>, %arg2: memref<32x96xbf16, #tpu.memory_space<vmem>>, %arg3: memref<1x96xf32, #tpu.memory_space<vmem>>, %arg4: memref<32x32xbf16, #tpu.memory_space<vmem>>, %arg5: memref<1x32xf32, #tpu.memory_space<vmem>>, %arg6: memref<32x128xbf16, #tpu.memory_space<vmem>>, %arg7: memref<1x128xf32, #tpu.memory_space<vmem>>, %arg8: memref<128x32xbf16, #tpu.memory_space<vmem>>, %arg9: memref<1x32xf32, #tpu.memory_space<vmem>>, %arg10: memref<1x32xf32, #tpu.memory_space<vmem>>, %arg11: memref<1x32xf32, #tpu.memory_space<vmem>>, %arg12: memref<1x32xf32, #tpu.memory_space<vmem>>, %arg13: memref<1x32xf32, #tpu.memory_space<vmem>>, %arg14: memref<2x8x32xf32, #tpu.memory_space<vmem>>) attributes {dimension_semantics = [#tpu.dimension_semantics<parallel>], iteration_bounds = array<i64: 1>, scalar_prefetch = 0 : i64, scratch_operands = 0 : i64, tpu.core_type = #tpu.core_type<tc>, window_params = [{transform_indices = @transform_0, window_bounds = array<i64: 2, 8, 32>}, {pipeline_mode = #tpu.pipeline_mode<synchronous>, transform_indices = @transform_1, window_bounds = array<i64: 32, 96>}, {pipeline_mode = #tpu.pipeline_mode<synchronous>, transform_indices = @transform_2, window_bounds = array<i64: 1, 96>}, {pipeline_mode = #tpu.pipeline_mode<synchronous>, transform_indices = @transform_3, window_bounds = array<i64: 32, 32>}, {pipeline_mode = #tpu.pipeline_mode<synchronous>, transform_indices = @transform_4, window_bounds = array<i64: 1, 32>}, {pipeline_mode = #tpu.pipeline_mode<synchronous>, transform_indices = @transform_5, window_bounds = array<i64: 32, 128>}, {pipeline_mode = #tpu.pipeline_mode<synchronous>, transform_indices = @transform_6, window_bounds = array<i64: 1, 128>}, {pipeline_mode = #tpu.pipeline_mode<synchronous>, transform_indices = @transform_7, window_bounds = array<i64: 128, 32>}, {pipeline_mode = #tpu.pipeline_mode<synchronous>, transform_indices = @transform_8, window_bounds = array<i64: 1, 32>}, {pipeline_mode = #tpu.pipeline_mode<synchronous>, transform_indices = @transform_9, window_bounds = array<i64: 1, 32>}, {pipeline_mode = #tpu.pipeline_mode<synchronous>, transform_indices = @transform_10, window_bounds = array<i64: 1, 32>}, {pipeline_mode = #tpu.pipeline_mode<synchronous>, transform_indices = @transform_11, window_bounds = array<i64: 1, 32>}, {pipeline_mode = #tpu.pipeline_mode<synchronous>, transform_indices = @transform_12, window_bounds = array<i64: 1, 32>}, {transform_indices = @transform_13, window_bounds = array<i64: 2, 8, 32>}]} {
    %c0 = arith.constant 0 : index
    %c0_0 = arith.constant 0 : index
    %c0_1 = arith.constant 0 : index
    %0 = vector.load %arg1[%c0, %c0_0, %c0_1] : memref<2x8x32xf32, #tpu.memory_space<vmem>>, vector<2x8x32xf32>
    %c0_2 = arith.constant 0 : index
    %c0_3 = arith.constant 0 : index
    %1 = vector.load %arg10[%c0_2, %c0_3] : memref<1x32xf32, #tpu.memory_space<vmem>>, vector<1x32xf32>
    %c0_4 = arith.constant 0 : index
    %c0_5 = arith.constant 0 : index
    %2 = vector.load %arg11[%c0_4, %c0_5] : memref<1x32xf32, #tpu.memory_space<vmem>>, vector<1x32xf32>
    %cst = arith.constant dense<0.000000e+00> : vector<2x8xf32>
    %3 = vector.multi_reduction <add>, %0, %cst [2] : vector<2x8x32xf32> to vector<2x8xf32>
    %4 = vector.shape_cast %3 : vector<2x8xf32> to vector<2x8x1xf32>
    %cst_6 = arith.constant 3.200000e+01 : f32
    %5 = vector.broadcast %cst_6 : f32 to vector<2x8x1xf32>
    %6 = arith.divf %4, %5 : vector<2x8x1xf32>
    %7 = vector.broadcast %6 : vector<2x8x1xf32> to vector<2x8x32xf32>
    %8 = arith.subf %0, %7 : vector<2x8x32xf32>
    %9 = arith.mulf %8, %8 : vector<2x8x32xf32>
    %cst_7 = arith.constant dense<0.000000e+00> : vector<2x8xf32>
    %10 = vector.multi_reduction <add>, %9, %cst_7 [2] : vector<2x8x32xf32> to vector<2x8xf32>
    %11 = vector.shape_cast %10 : vector<2x8xf32> to vector<2x8x1xf32>
    %cst_8 = arith.constant 3.200000e+01 : f32
    %12 = vector.broadcast %cst_8 : f32 to vector<2x8x1xf32>
    %13 = arith.divf %11, %12 : vector<2x8x1xf32>
    %14 = vector.broadcast %6 : vector<2x8x1xf32> to vector<2x8x32xf32>
    %15 = arith.subf %0, %14 : vector<2x8x32xf32>
    %cst_9 = arith.constant 9.99999974E-6 : f32
    %16 = vector.broadcast %cst_9 : f32 to vector<2x8x1xf32>
    %17 = arith.addf %13, %16 : vector<2x8x1xf32>
    %18 = math.rsqrt %17 : vector<2x8x1xf32>
    %19 = vector.broadcast %18 : vector<2x8x1xf32> to vector<2x8x32xf32>
    %20 = arith.mulf %15, %19 : vector<2x8x32xf32>
    %21 = vector.shape_cast %1 : vector<1x32xf32> to vector<1x1x32xf32>
    %22 = vector.broadcast %21 : vector<1x1x32xf32> to vector<2x8x32xf32>
    %23 = arith.mulf %20, %22 : vector<2x8x32xf32>
    %24 = vector.shape_cast %2 : vector<1x32xf32> to vector<1x1x32xf32>
    %25 = vector.broadcast %24 : vector<1x1x32xf32> to vector<2x8x32xf32>
    %26 = arith.addf %23, %25 : vector<2x8x32xf32>
    %27 = vector.shape_cast %26 : vector<2x8x32xf32> to vector<16x32xf32>
    %28 = arith.truncf %27 : vector<16x32xf32> to vector<16x32xbf16>
    %c0_10 = arith.constant 0 : index
    %c0_11 = arith.constant 0 : index
    %29 = vector.load %arg2[%c0_10, %c0_11] : memref<32x96xbf16, #tpu.memory_space<vmem>>, vector<32x96xbf16>
    %cst_12 = arith.constant dense<0.000000e+00> : vector<16x96xf32>
    %30 = tpu.matmul %28, %29, %cst_12 {dimension_numbers = #tpu.dot_dimension_numbers<[1], [0], [0], [1], [0, 0, 1, 1], [], []>} : vector<16x32xbf16>, vector<32x96xbf16>, vector<16x96xf32> -> vector<16x96xf32>
    %c0_13 = arith.constant 0 : index
    %c0_14 = arith.constant 0 : index
    %31 = vector.load %arg3[%c0_13, %c0_14] : memref<1x96xf32, #tpu.memory_space<vmem>>, vector<1x96xf32>
    %32 = vector.broadcast %31 : vector<1x96xf32> to vector<16x96xf32>
    %33 = arith.addf %30, %32 : vector<16x96xf32>
    %34 = vector.shape_cast %33 : vector<16x96xf32> to vector<2x8x96xf32>
    %35 = vector.extract_strided_slice %34 {offsets = [0, 0, 0], sizes = [2, 8, 8], strides = [1, 1, 1]} : vector<2x8x96xf32> to vector<2x8x8xf32>
    %36 = vector.extract_strided_slice %34 {offsets = [0, 0, 32], sizes = [2, 8, 8], strides = [1, 1, 1]} : vector<2x8x96xf32> to vector<2x8x8xf32>
    %37 = vector.extract_strided_slice %34 {offsets = [0, 0, 64], sizes = [2, 8, 8], strides = [1, 1, 1]} : vector<2x8x96xf32> to vector<2x8x8xf32>
    %38 = arith.truncf %35 : vector<2x8x8xf32> to vector<2x8x8xbf16>
    %39 = arith.truncf %36 : vector<2x8x8xf32> to vector<2x8x8xbf16>
    "tpu.trace_start"() <{level = 10 : i32, message = "bqd,bkd->bqk"}> : () -> ()
    %cst_15 = arith.constant dense<0.000000e+00> : vector<2x8x8xf32>
    %40 = tpu.matmul %38, %39, %cst_15 {dimension_numbers = #tpu.dot_dimension_numbers<[2], [2], [1], [1], [0, 0, 0, 1, 1, 1], [0], [0]>} : vector<2x8x8xbf16>, vector<2x8x8xbf16>, vector<2x8x8xf32> -> vector<2x8x8xf32>
    "tpu.trace_stop"() : () -> ()
    %cst_16 = arith.constant dense<0xFF800000> : vector<2x8xf32>
    %41 = vector.multi_reduction <maximumf>, %40, %cst_16 [2] : vector<2x8x8xf32> to vector<2x8xf32>
    %42 = vector.shape_cast %41 : vector<2x8xf32> to vector<2x8x1xf32>
    %43 = vector.broadcast %42 : vector<2x8x1xf32> to vector<2x8x8xf32>
    %44 = arith.subf %40, %43 : vector<2x8x8xf32>
    %45 = math.exp %44 : vector<2x8x8xf32>
    %cst_17 = arith.constant dense<0.000000e+00> : vector<2x8xf32>
    %46 = vector.multi_reduction <add>, %45, %cst_17 [2] : vector<2x8x8xf32> to vector<2x8xf32>
    %47 = vector.shape_cast %46 : vector<2x8xf32> to vector<2x8x1xf32>
    %48 = tpu.reciprocal %47 {approx = true} : vector<2x8x1xf32> -> vector<2x8x1xf32>
    %49 = vector.broadcast %48 : vector<2x8x1xf32> to vector<2x8x8xf32>
    %50 = arith.mulf %45, %49 : vector<2x8x8xf32>
    %51 = arith.truncf %50 : vector<2x8x8xf32> to vector<2x8x8xbf16>
    %52 = arith.truncf %37 : vector<2x8x8xf32> to vector<2x8x8xbf16>
    "tpu.trace_start"() <{level = 10 : i32, message = "bqk,bkd->bqd"}> : () -> ()
    %cst_18 = arith.constant dense<0.000000e+00> : vector<2x8x8xf32>
    %53 = tpu.matmul %51, %52, %cst_18 {dimension_numbers = #tpu.dot_dimension_numbers<[2], [1], [1], [2], [0, 0, 0, 1, 1, 2], [0], [0]>} : vector<2x8x8xbf16>, vector<2x8x8xbf16>, vector<2x8x8xf32> -> vector<2x8x8xf32>
    "tpu.trace_stop"() : () -> ()
    %54 = vector.extract_strided_slice %34 {offsets = [0, 0, 8], sizes = [2, 8, 8], strides = [1, 1, 1]} : vector<2x8x96xf32> to vector<2x8x8xf32>
    %55 = vector.extract_strided_slice %34 {offsets = [0, 0, 40], sizes = [2, 8, 8], strides = [1, 1, 1]} : vector<2x8x96xf32> to vector<2x8x8xf32>
    %56 = vector.extract_strided_slice %34 {offsets = [0, 0, 72], sizes = [2, 8, 8], strides = [1, 1, 1]} : vector<2x8x96xf32> to vector<2x8x8xf32>
    %57 = arith.truncf %54 : vector<2x8x8xf32> to vector<2x8x8xbf16>
    %58 = arith.truncf %55 : vector<2x8x8xf32> to vector<2x8x8xbf16>
    "tpu.trace_start"() <{level = 10 : i32, message = "bqd,bkd->bqk"}> : () -> ()
    %cst_19 = arith.constant dense<0.000000e+00> : vector<2x8x8xf32>
    %59 = tpu.matmul %57, %58, %cst_19 {dimension_numbers = #tpu.dot_dimension_numbers<[2], [2], [1], [1], [0, 0, 0, 1, 1, 1], [0], [0]>} : vector<2x8x8xbf16>, vector<2x8x8xbf16>, vector<2x8x8xf32> -> vector<2x8x8xf32>
    "tpu.trace_stop"() : () -> ()
    %cst_20 = arith.constant dense<0xFF800000> : vector<2x8xf32>
    %60 = vector.multi_reduction <maximumf>, %59, %cst_20 [2] : vector<2x8x8xf32> to vector<2x8xf32>
    %61 = vector.shape_cast %60 : vector<2x8xf32> to vector<2x8x1xf32>
    %62 = vector.broadcast %61 : vector<2x8x1xf32> to vector<2x8x8xf32>
    %63 = arith.subf %59, %62 : vector<2x8x8xf32>
    %64 = math.exp %63 : vector<2x8x8xf32>
    %cst_21 = arith.constant dense<0.000000e+00> : vector<2x8xf32>
    %65 = vector.multi_reduction <add>, %64, %cst_21 [2] : vector<2x8x8xf32> to vector<2x8xf32>
    %66 = vector.shape_cast %65 : vector<2x8xf32> to vector<2x8x1xf32>
    %67 = tpu.reciprocal %66 {approx = true} : vector<2x8x1xf32> -> vector<2x8x1xf32>
    %68 = vector.broadcast %67 : vector<2x8x1xf32> to vector<2x8x8xf32>
    %69 = arith.mulf %64, %68 : vector<2x8x8xf32>
    %70 = arith.truncf %69 : vector<2x8x8xf32> to vector<2x8x8xbf16>
    %71 = arith.truncf %56 : vector<2x8x8xf32> to vector<2x8x8xbf16>
    "tpu.trace_start"() <{level = 10 : i32, message = "bqk,bkd->bqd"}> : () -> ()
    %cst_22 = arith.constant dense<0.000000e+00> : vector<2x8x8xf32>
    %72 = tpu.matmul %70, %71, %cst_22 {dimension_numbers = #tpu.dot_dimension_numbers<[2], [1], [1], [2], [0, 0, 0, 1, 1, 2], [0], [0]>} : vector<2x8x8xbf16>, vector<2x8x8xbf16>, vector<2x8x8xf32> -> vector<2x8x8xf32>
    "tpu.trace_stop"() : () -> ()
    %73 = vector.extract_strided_slice %34 {offsets = [0, 0, 16], sizes = [2, 8, 8], strides = [1, 1, 1]} : vector<2x8x96xf32> to vector<2x8x8xf32>
    %74 = vector.extract_strided_slice %34 {offsets = [0, 0, 48], sizes = [2, 8, 8], strides = [1, 1, 1]} : vector<2x8x96xf32> to vector<2x8x8xf32>
    %75 = vector.extract_strided_slice %34 {offsets = [0, 0, 80], sizes = [2, 8, 8], strides = [1, 1, 1]} : vector<2x8x96xf32> to vector<2x8x8xf32>
    %76 = arith.truncf %73 : vector<2x8x8xf32> to vector<2x8x8xbf16>
    %77 = arith.truncf %74 : vector<2x8x8xf32> to vector<2x8x8xbf16>
    "tpu.trace_start"() <{level = 10 : i32, message = "bqd,bkd->bqk"}> : () -> ()
    %cst_23 = arith.constant dense<0.000000e+00> : vector<2x8x8xf32>
    %78 = tpu.matmul %76, %77, %cst_23 {dimension_numbers = #tpu.dot_dimension_numbers<[2], [2], [1], [1], [0, 0, 0, 1, 1, 1], [0], [0]>} : vector<2x8x8xbf16>, vector<2x8x8xbf16>, vector<2x8x8xf32> -> vector<2x8x8xf32>
    "tpu.trace_stop"() : () -> ()
    %cst_24 = arith.constant dense<0xFF800000> : vector<2x8xf32>
    %79 = vector.multi_reduction <maximumf>, %78, %cst_24 [2] : vector<2x8x8xf32> to vector<2x8xf32>
    %80 = vector.shape_cast %79 : vector<2x8xf32> to vector<2x8x1xf32>
    %81 = vector.broadcast %80 : vector<2x8x1xf32> to vector<2x8x8xf32>
    %82 = arith.subf %78, %81 : vector<2x8x8xf32>
    %83 = math.exp %82 : vector<2x8x8xf32>
    %cst_25 = arith.constant dense<0.000000e+00> : vector<2x8xf32>
    %84 = vector.multi_reduction <add>, %83, %cst_25 [2] : vector<2x8x8xf32> to vector<2x8xf32>
    %85 = vector.shape_cast %84 : vector<2x8xf32> to vector<2x8x1xf32>
    %86 = tpu.reciprocal %85 {approx = true} : vector<2x8x1xf32> -> vector<2x8x1xf32>
    %87 = vector.broadcast %86 : vector<2x8x1xf32> to vector<2x8x8xf32>
    %88 = arith.mulf %83, %87 : vector<2x8x8xf32>
    %89 = arith.truncf %88 : vector<2x8x8xf32> to vector<2x8x8xbf16>
    %90 = arith.truncf %75 : vector<2x8x8xf32> to vector<2x8x8xbf16>
    "tpu.trace_start"() <{level = 10 : i32, message = "bqk,bkd->bqd"}> : () -> ()
    %cst_26 = arith.constant dense<0.000000e+00> : vector<2x8x8xf32>
    %91 = tpu.matmul %89, %90, %cst_26 {dimension_numbers = #tpu.dot_dimension_numbers<[2], [1], [1], [2], [0, 0, 0, 1, 1, 2], [0], [0]>} : vector<2x8x8xbf16>, vector<2x8x8xbf16>, vector<2x8x8xf32> -> vector<2x8x8xf32>
    "tpu.trace_stop"() : () -> ()
    %92 = vector.extract_strided_slice %34 {offsets = [0, 0, 24], sizes = [2, 8, 8], strides = [1, 1, 1]} : vector<2x8x96xf32> to vector<2x8x8xf32>
    %93 = vector.extract_strided_slice %34 {offsets = [0, 0, 56], sizes = [2, 8, 8], strides = [1, 1, 1]} : vector<2x8x96xf32> to vector<2x8x8xf32>
    %94 = vector.extract_strided_slice %34 {offsets = [0, 0, 88], sizes = [2, 8, 8], strides = [1, 1, 1]} : vector<2x8x96xf32> to vector<2x8x8xf32>
    %95 = arith.truncf %92 : vector<2x8x8xf32> to vector<2x8x8xbf16>
    %96 = arith.truncf %93 : vector<2x8x8xf32> to vector<2x8x8xbf16>
    "tpu.trace_start"() <{level = 10 : i32, message = "bqd,bkd->bqk"}> : () -> ()
    %cst_27 = arith.constant dense<0.000000e+00> : vector<2x8x8xf32>
    %97 = tpu.matmul %95, %96, %cst_27 {dimension_numbers = #tpu.dot_dimension_numbers<[2], [2], [1], [1], [0, 0, 0, 1, 1, 1], [0], [0]>} : vector<2x8x8xbf16>, vector<2x8x8xbf16>, vector<2x8x8xf32> -> vector<2x8x8xf32>
    "tpu.trace_stop"() : () -> ()
    %cst_28 = arith.constant dense<0xFF800000> : vector<2x8xf32>
    %98 = vector.multi_reduction <maximumf>, %97, %cst_28 [2] : vector<2x8x8xf32> to vector<2x8xf32>
    %99 = vector.shape_cast %98 : vector<2x8xf32> to vector<2x8x1xf32>
    %100 = vector.broadcast %99 : vector<2x8x1xf32> to vector<2x8x8xf32>
    %101 = arith.subf %97, %100 : vector<2x8x8xf32>
    %102 = math.exp %101 : vector<2x8x8xf32>
    %cst_29 = arith.constant dense<0.000000e+00> : vector<2x8xf32>
    %103 = vector.multi_reduction <add>, %102, %cst_29 [2] : vector<2x8x8xf32> to vector<2x8xf32>
    %104 = vector.shape_cast %103 : vector<2x8xf32> to vector<2x8x1xf32>
    %105 = tpu.reciprocal %104 {approx = true} : vector<2x8x1xf32> -> vector<2x8x1xf32>
    %106 = vector.broadcast %105 : vector<2x8x1xf32> to vector<2x8x8xf32>
    %107 = arith.mulf %102, %106 : vector<2x8x8xf32>
    %108 = arith.truncf %107 : vector<2x8x8xf32> to vector<2x8x8xbf16>
    %109 = arith.truncf %94 : vector<2x8x8xf32> to vector<2x8x8xbf16>
    "tpu.trace_start"() <{level = 10 : i32, message = "bqk,bkd->bqd"}> : () -> ()
    %cst_30 = arith.constant dense<0.000000e+00> : vector<2x8x8xf32>
    %110 = tpu.matmul %108, %109, %cst_30 {dimension_numbers = #tpu.dot_dimension_numbers<[2], [1], [1], [2], [0, 0, 0, 1, 1, 2], [0], [0]>} : vector<2x8x8xbf16>, vector<2x8x8xbf16>, vector<2x8x8xf32> -> vector<2x8x8xf32>
    "tpu.trace_stop"() : () -> ()
    %111 = tpu.concatenate %53, %72, %91, %110 in 2 : vector<2x8x8xf32>, vector<2x8x8xf32>, vector<2x8x8xf32>, vector<2x8x8xf32> -> vector<2x8x32xf32>
    %112 = vector.shape_cast %111 : vector<2x8x32xf32> to vector<16x32xf32>
    %113 = arith.truncf %112 : vector<16x32xf32> to vector<16x32xbf16>
    %c0_31 = arith.constant 0 : index
    %c0_32 = arith.constant 0 : index
    %114 = vector.load %arg4[%c0_31, %c0_32] : memref<32x32xbf16, #tpu.memory_space<vmem>>, vector<32x32xbf16>
    %cst_33 = arith.constant dense<0.000000e+00> : vector<16x32xf32>
    %115 = tpu.matmul %113, %114, %cst_33 {dimension_numbers = #tpu.dot_dimension_numbers<[1], [0], [0], [1], [0, 0, 1, 1], [], []>} : vector<16x32xbf16>, vector<32x32xbf16>, vector<16x32xf32> -> vector<16x32xf32>
    %c0_34 = arith.constant 0 : index
    %c0_35 = arith.constant 0 : index
    %116 = vector.load %arg5[%c0_34, %c0_35] : memref<1x32xf32, #tpu.memory_space<vmem>>, vector<1x32xf32>
    %117 = vector.broadcast %116 : vector<1x32xf32> to vector<16x32xf32>
    %118 = arith.addf %115, %117 : vector<16x32xf32>
    %119 = vector.shape_cast %118 : vector<16x32xf32> to vector<2x8x32xf32>
    %120 = arith.addf %0, %119 : vector<2x8x32xf32>
    %c0_36 = arith.constant 0 : index
    %c0_37 = arith.constant 0 : index
    %121 = vector.load %arg12[%c0_36, %c0_37] : memref<1x32xf32, #tpu.memory_space<vmem>>, vector<1x32xf32>
    %c0_38 = arith.constant 0 : index
    %c0_39 = arith.constant 0 : index
    %122 = vector.load %arg13[%c0_38, %c0_39] : memref<1x32xf32, #tpu.memory_space<vmem>>, vector<1x32xf32>
    %cst_40 = arith.constant dense<0.000000e+00> : vector<2x8xf32>
    %123 = vector.multi_reduction <add>, %120, %cst_40 [2] : vector<2x8x32xf32> to vector<2x8xf32>
    %124 = vector.shape_cast %123 : vector<2x8xf32> to vector<2x8x1xf32>
    %cst_41 = arith.constant 3.200000e+01 : f32
    %125 = vector.broadcast %cst_41 : f32 to vector<2x8x1xf32>
    %126 = arith.divf %124, %125 : vector<2x8x1xf32>
    %127 = vector.broadcast %126 : vector<2x8x1xf32> to vector<2x8x32xf32>
    %128 = arith.subf %120, %127 : vector<2x8x32xf32>
    %129 = arith.mulf %128, %128 : vector<2x8x32xf32>
    %cst_42 = arith.constant dense<0.000000e+00> : vector<2x8xf32>
    %130 = vector.multi_reduction <add>, %129, %cst_42 [2] : vector<2x8x32xf32> to vector<2x8xf32>
    %131 = vector.shape_cast %130 : vector<2x8xf32> to vector<2x8x1xf32>
    %cst_43 = arith.constant 3.200000e+01 : f32
    %132 = vector.broadcast %cst_43 : f32 to vector<2x8x1xf32>
    %133 = arith.divf %131, %132 : vector<2x8x1xf32>
    %134 = vector.broadcast %126 : vector<2x8x1xf32> to vector<2x8x32xf32>
    %135 = arith.subf %120, %134 : vector<2x8x32xf32>
    %cst_44 = arith.constant 9.99999974E-6 : f32
    %136 = vector.broadcast %cst_44 : f32 to vector<2x8x1xf32>
    %137 = arith.addf %133, %136 : vector<2x8x1xf32>
    %138 = math.rsqrt %137 : vector<2x8x1xf32>
    %139 = vector.broadcast %138 : vector<2x8x1xf32> to vector<2x8x32xf32>
    %140 = arith.mulf %135, %139 : vector<2x8x32xf32>
    %141 = vector.shape_cast %121 : vector<1x32xf32> to vector<1x1x32xf32>
    %142 = vector.broadcast %141 : vector<1x1x32xf32> to vector<2x8x32xf32>
    %143 = arith.mulf %140, %142 : vector<2x8x32xf32>
    %144 = vector.shape_cast %122 : vector<1x32xf32> to vector<1x1x32xf32>
    %145 = vector.broadcast %144 : vector<1x1x32xf32> to vector<2x8x32xf32>
    %146 = arith.addf %143, %145 : vector<2x8x32xf32>
    %147 = vector.shape_cast %146 : vector<2x8x32xf32> to vector<16x32xf32>
    %148 = arith.truncf %147 : vector<16x32xf32> to vector<16x32xbf16>
    %c0_45 = arith.constant 0 : index
    %c0_46 = arith.constant 0 : index
    %149 = vector.load %arg6[%c0_45, %c0_46] : memref<32x128xbf16, #tpu.memory_space<vmem>>, vector<32x128xbf16>
    %cst_47 = arith.constant dense<0.000000e+00> : vector<16x128xf32>
    %150 = tpu.matmul %148, %149, %cst_47 {dimension_numbers = #tpu.dot_dimension_numbers<[1], [0], [0], [1], [0, 0, 1, 1], [], []>} : vector<16x32xbf16>, vector<32x128xbf16>, vector<16x128xf32> -> vector<16x128xf32>
    %c0_48 = arith.constant 0 : index
    %c0_49 = arith.constant 0 : index
    %151 = vector.load %arg7[%c0_48, %c0_49] : memref<1x128xf32, #tpu.memory_space<vmem>>, vector<1x128xf32>
    %152 = vector.broadcast %151 : vector<1x128xf32> to vector<16x128xf32>
    %153 = arith.addf %150, %152 : vector<16x128xf32>
    %cst_50 = arith.constant -1.702000e+00 : f32
    %154 = vector.broadcast %cst_50 : f32 to vector<16x128xf32>
    %155 = arith.mulf %154, %153 : vector<16x128xf32>
    %156 = math.exp %155 : vector<16x128xf32>
    %cst_51 = arith.constant 1.000000e+00 : f32
    %157 = vector.broadcast %cst_51 : f32 to vector<16x128xf32>
    %158 = arith.addf %157, %156 : vector<16x128xf32>
    %cst_52 = arith.constant 1.000000e+00 : f32
    %159 = vector.broadcast %cst_52 : f32 to vector<16x128xf32>
    %160 = arith.divf %159, %158 : vector<16x128xf32>
    %161 = arith.mulf %153, %160 : vector<16x128xf32>
    %162 = arith.truncf %161 : vector<16x128xf32> to vector<16x128xbf16>
    %c0_53 = arith.constant 0 : index
    %c0_54 = arith.constant 0 : index
    %163 = vector.load %arg8[%c0_53, %c0_54] : memref<128x32xbf16, #tpu.memory_space<vmem>>, vector<128x32xbf16>
    %cst_55 = arith.constant dense<0.000000e+00> : vector<16x32xf32>
    %164 = tpu.matmul %162, %163, %cst_55 {dimension_numbers = #tpu.dot_dimension_numbers<[1], [0], [0], [1], [0, 0, 1, 1], [], []>} : vector<16x128xbf16>, vector<128x32xbf16>, vector<16x32xf32> -> vector<16x32xf32>
    %c0_56 = arith.constant 0 : index
    %c0_57 = arith.constant 0 : index
    %165 = vector.load %arg9[%c0_56, %c0_57] : memref<1x32xf32, #tpu.memory_space<vmem>>, vector<1x32xf32>
    %166 = vector.broadcast %165 : vector<1x32xf32> to vector<16x32xf32>
    %167 = arith.addf %164, %166 : vector<16x32xf32>
    %168 = vector.shape_cast %167 : vector<16x32xf32> to vector<2x8x32xf32>
    %169 = arith.addf %120, %168 : vector<2x8x32xf32>
    %c0_58 = arith.constant 0 : index
    %c0_59 = arith.constant 0 : index
    %c0_60 = arith.constant 0 : index
    %170 = vector.load %arg14[%c0_58, %c0_59, %c0_60] : memref<2x8x32xf32, #tpu.memory_space<vmem>>, vector<2x8x32xf32>
    tpu.vector_store %arg14[%c0_58, %c0_59, %c0_60], %169 {strides = array<i32>} : memref<2x8x32xf32, #tpu.memory_space<vmem>>, vector<2x8x32xf32>,
    return
  }
  func.func @transform_0(%arg0: i32) -> (i32, i32, i32) {
    %c0_i32 = arith.constant 0 : i32
    %c0_i32_0 = arith.constant 0 : i32
    %c0_i32_1 = arith.constant 0 : i32
    return %arg0, %c0_i32, %c0_i32_0 : i32, i32, i32
  }
  func.func @transform_1(%arg0: i32) -> (i32, i32) {
    %c0_i32 = arith.constant 0 : i32
    %c0_i32_0 = arith.constant 0 : i32
    %c0_i32_1 = arith.constant 0 : i32
    return %c0_i32, %c0_i32_0 : i32, i32
  }
  func.func @transform_2(%arg0: i32) -> (i32, i32) {
    %c0_i32 = arith.constant 0 : i32
    %c0_i32_0 = arith.constant 0 : i32
    %c0_i32_1 = arith.constant 0 : i32
    return %c0_i32, %c0_i32_0 : i32, i32
  }
  func.func @transform_3(%arg0: i32) -> (i32, i32) {
    %c0_i32 = arith.constant 0 : i32
    %c0_i32_0 = arith.constant 0 : i32
    %c0_i32_1 = arith.constant 0 : i32
    return %c0_i32, %c0_i32_0 : i32, i32
  }
  func.func @transform_4(%arg0: i32) -> (i32, i32) {
    %c0_i32 = arith.constant 0 : i32
    %c0_i32_0 = arith.constant 0 : i32
    %c0_i32_1 = arith.constant 0 : i32
    return %c0_i32, %c0_i32_0 : i32, i32
  }
  func.func @transform_5(%arg0: i32) -> (i32, i32) {
    %c0_i32 = arith.constant 0 : i32
    %c0_i32_0 = arith.constant 0 : i32
    %c0_i32_1 = arith.constant 0 : i32
    return %c0_i32, %c0_i32_0 : i32, i32
  }
  func.func @transform_6(%arg0: i32) -> (i32, i32) {
    %c0_i32 = arith.constant 0 : i32
    %c0_i32_0 = arith.constant 0 : i32
    %c0_i32_1 = arith.constant 0 : i32
    return %c0_i32, %c0_i32_0 : i32, i32
  }
  func.func @transform_7(%arg0: i32) -> (i32, i32) {
    %c0_i32 = arith.constant 0 : i32
    %c0_i32_0 = arith.constant 0 : i32
    %c0_i32_1 = arith.constant 0 : i32
    return %c0_i32, %c0_i32_0 : i32, i32
  }
  func.func @transform_8(%arg0: i32) -> (i32, i32) {
    %c0_i32 = arith.constant 0 : i32
    %c0_i32_0 = arith.constant 0 : i32
    %c0_i32_1 = arith.constant 0 : i32
    return %c0_i32, %c0_i32_0 : i32, i32
  }
  func.func @transform_9(%arg0: i32) -> (i32, i32) {
    %c0_i32 = arith.constant 0 : i32
    %c0_i32_0 = arith.constant 0 : i32
    %c0_i32_1 = arith.constant 0 : i32
    return %c0_i32, %c0_i32_0 : i32, i32
  }
  func.func @transform_10(%arg0: i32) -> (i32, i32) {
    %c0_i32 = arith.constant 0 : i32
    %c0_i32_0 = arith.constant 0 : i32
    %c0_i32_1 = arith.constant 0 : i32
    return %c0_i32, %c0_i32_0 : i32, i32
  }
  func.func @transform_11(%arg0: i32) -> (i32, i32) {
    %c0_i32 = arith.constant 0 : i32
    %c0_i32_0 = arith.constant 0 : i32
    %c0_i32_1 = arith.constant 0 : i32
    return %c0_i32, %c0_i32_0 : i32, i32
  }
  func.func @transform_12(%arg0: i32) -> (i32, i32) {
    %c0_i32 = arith.constant 0 : i32
    %c0_i32_0 = arith.constant 0 : i32
    %c0_i32_1 = arith.constant 0 : i32
    return %c0_i32, %c0_i32_0 : i32, i32
  }
  func.func @transform_13(%arg0: i32) -> (i32, i32, i32) {
    %c0_i32 = arith.constant 0 : i32
    %c0_i32_0 = arith.constant 0 : i32
    %c0_i32_1 = arith.constant 0 : i32
    return %arg0, %c0_i32, %c0_i32_0 : i32, i32, i32
  }
}

</mosaic_0001>

<llo_original>
// kernel: tpu_custom_call.1
$region0: #{tpu_custom_call.1}
  #allocation0 [shape = 'u32[]', space=smem, size = 0x4, offset = 0x4, fixed_abs, tag = 'smem constant byte address 0x4 - core index']
  #allocation1 [shape = 'u32[144,128]{1,0:T(1,128)}', space=vmem, size = 0x12000, scoped, tag = 'internal scratch']
  %s0 = inlined_call_operand.vmem [shape: f32[2,8,32], index: 0, kind: input, shape index: {}]
  %s1 = inlined_call_operand.vmem [shape: bf16[32,96], index: 1, kind: input, shape index: {}]
  %s2 = inlined_call_operand.vmem [shape: f32[1,96], index: 2, kind: input, shape index: {}]
  %s3 = inlined_call_operand.vmem [shape: bf16[32,32], index: 3, kind: input, shape index: {}]
  %s4 = inlined_call_operand.vmem [shape: f32[1,32], index: 4, kind: input, shape index: {}]
  %s5 = inlined_call_operand.vmem [shape: bf16[32,128], index: 5, kind: input, shape index: {}]
  %s6 = inlined_call_operand.vmem [shape: f32[1,128], index: 6, kind: input, shape index: {}]
  %s7 = inlined_call_operand.vmem [shape: bf16[128,32], index: 7, kind: input, shape index: {}]
  %s8 = inlined_call_operand.vmem [shape: f32[1,32], index: 8, kind: input, shape index: {}]
  %s9 = inlined_call_operand.vmem [shape: f32[1,32], index: 9, kind: input, shape index: {}]
  %s10 = inlined_call_operand.vmem [shape: f32[1,32], index: 10, kind: input, shape index: {}]
  %s11 = inlined_call_operand.vmem [shape: f32[1,32], index: 11, kind: input, shape index: {}]
  %s12 = inlined_call_operand.vmem [shape: f32[1,32], index: 12, kind: input, shape index: {}]
  %s13 = inlined_call_operand.hbm [shape: f32[2,8,32], index: 13, kind: output, shape index: {}]
  %s14 = sld [smem:[#allocation0]]
  $region62: #{tpu_custom_call.1} parent=0
    _
  %s16 = ssub.s32 1, %s14
  %s17 = scalar_select 0, %s16, %s14
  $region1: #{tpu_custom_call.1} parent=0
    #allocation2 [shape = 'u8[8192]{0}', space=vmem, size = 0x2000, scoped, tag = 'output window, operand 0, single buffered']
    #allocation3 [shape = 's32[1]{0}', space=sflag, size = 0x4, scoped, tag = 'scoped memory for tpu_custom_call.1']
    %18 = vsyncpa [#allocation3], 0
    // Predicated region
    $region2: #{tpu_custom_call.1} parent=1 // pred_check
      _
    $region3: #{tpu_custom_call.1} parent=1 // pred_check_branch
      %20 = sbr.rel (0) target = $region5
    $region4: #{tpu_custom_call.1} parent=1 // pred_region
      _
    $region5: #{tpu_custom_call.1} parent=1 // pred_fallthru
      _
    // Predicated region
    $region6: #{tpu_custom_call.1} parent=1 // pred_check
      _
    $region7: #{tpu_custom_call.1} parent=1 // pred_check_branch
      %22 = sbr.rel (0) target = $region9
    $region8: #{tpu_custom_call.1} parent=1 // pred_region
      _
    $region9: #{tpu_custom_call.1} parent=1 // pred_fallthru
      _
    // Predicated region
    $region10: #{tpu_custom_call.1} parent=1 // pred_check
      _
    $region11: #{tpu_custom_call.1} parent=1 // pred_check_branch
      %24 = sbr.rel (0) target = $region13
    $region12: #{tpu_custom_call.1} parent=1 // pred_region
      _
    $region13: #{tpu_custom_call.1} parent=1 // pred_fallthru
      _
    // Predicated region
    $region14: #{tpu_custom_call.1} parent=1 // pred_check
      _
    $region15: #{tpu_custom_call.1} parent=1 // pred_check_branch
      %26 = sbr.rel (0) target = $region17
    $region16: #{tpu_custom_call.1} parent=1 // pred_region
      _
    $region17: #{tpu_custom_call.1} parent=1 // pred_fallthru
      _
    // Predicated region
    $region18: #{tpu_custom_call.1} parent=1 // pred_check
      _
    $region19: #{tpu_custom_call.1} parent=1 // pred_check_branch
      %28 = sbr.rel (0) target = $region21
    $region20: #{tpu_custom_call.1} parent=1 // pred_region
      _
    $region21: #{tpu_custom_call.1} parent=1 // pred_fallthru
      _
    // Predicated region
    $region22: #{tpu_custom_call.1} parent=1 // pred_check
      _
    $region23: #{tpu_custom_call.1} parent=1 // pred_check_branch
      %30 = sbr.rel (0) target = $region25
    $region24: #{tpu_custom_call.1} parent=1 // pred_region
      _
    $region25: #{tpu_custom_call.1} parent=1 // pred_fallthru
      _
    // Predicated region
    $region26: #{tpu_custom_call.1} parent=1 // pred_check
      _
    $region27: #{tpu_custom_call.1} parent=1 // pred_check_branch
      %32 = sbr.rel (0) target = $region29
    $region28: #{tpu_custom_call.1} parent=1 // pred_region
      _
    $region29: #{tpu_custom_call.1} parent=1 // pred_fallthru
      _
    // Predicated region
    $region30: #{tpu_custom_call.1} parent=1 // pred_check
      _
    $region31: #{tpu_custom_call.1} parent=1 // pred_check_branch
      %34 = sbr.rel (0) target = $region33
    $region32: #{tpu_custom_call.1} parent=1 // pred_region
      _
    $region33: #{tpu_custom_call.1} parent=1 // pred_fallthru
      _
    // Predicated region
    $region34: #{tpu_custom_call.1} parent=1 // pred_check
      _
    $region35: #{tpu_custom_call.1} parent=1 // pred_check_branch
      %36 = sbr.rel (0) target = $region37
    $region36: #{tpu_custom_call.1} parent=1 // pred_region
      _
    $region37: #{tpu_custom_call.1} parent=1 // pred_fallthru
      _
    // Predicated region
    $region38: #{tpu_custom_call.1} parent=1 // pred_check
      _
    $region39: #{tpu_custom_call.1} parent=1 // pred_check_branch
      %38 = sbr.rel (0) target = $region41
    $region40: #{tpu_custom_call.1} parent=1 // pred_region
      _
    $region41: #{tpu_custom_call.1} parent=1 // pred_fallthru
      _
    // Predicated region
    $region42: #{tpu_custom_call.1} parent=1 // pred_check
      _
    $region43: #{tpu_custom_call.1} parent=1 // pred_check_branch
      %40 = sbr.rel (0) target = $region45
    $region44: #{tpu_custom_call.1} parent=1 // pred_region
      _
    $region45: #{tpu_custom_call.1} parent=1 // pred_fallthru
      _
    // Predicated region
    $region46: #{tpu_custom_call.1} parent=1 // pred_check
      _
    $region47: #{tpu_custom_call.1} parent=1 // pred_check_branch
      %42 = sbr.rel (0) target = $region49
    $region48: #{tpu_custom_call.1} parent=1 // pred_region
      _
    $region49: #{tpu_custom_call.1} parent=1 // pred_fallthru
      _
    // Predicated region
    $region50: #{tpu_custom_call.1} parent=1 // pred_check
      _
    $region51: #{tpu_custom_call.1} parent=1 // pred_check_branch
      %44 = sbr.rel (0) target = $region53
    $region52: #{tpu_custom_call.1} parent=1 // pred_region
      _
    $region53: #{tpu_custom_call.1} parent=1 // pred_fallthru
      _
    %v46 = vld [vmem:[%s0] sm:$0xff]
    %v47 = vld [vmem:[%s0 + $0x8] sm:$0xff]
    %v48 = vld [vmem:[%s9] sm:$0x1]
    %v49 = vld [vmem:[%s10] sm:$0x1]
    %vm50 = vcmask 261120
    %v51 = vsel %vm50, %v46, 0.0
    %52 = vadd.xlane.f32.xlu0 %v51
    %v53 = vpop.xlane.xlu0 %52
    %v54 = vsel %vm50, %v47, 0.0
    %55 = vadd.xlane.f32.xlu0 %v54
    %v56 = vpop.xlane.xlu0 %55
    %v57 = vrcp.pop 32.0
    %v58 = vmul.f32 %v53, %v57
    %v59 = vmul.f32 %v56, %v57
    %v60 = vsub.f32 %v46, %v58
    %v61 = vsub.f32 %v47, %v59
    %v62 = vmul.f32 %v60, %v60
    %v63 = vmul.f32 %v61, %v61
    %v64 = vsel %vm50, %v62, 0.0
    %65 = vadd.xlane.f32.xlu0 %v64
    %v66 = vpop.xlane.xlu0 %65
    %v67 = vsel %vm50, %v63, 0.0
    %68 = vadd.xlane.f32.xlu0 %v67
    %v69 = vpop.xlane.xlu0 %68
    %v70 = vmul.f32 %v66, %v57
    %v71 = vmul.f32 %v69, %v57
    %v72 = vadd.f32 %v70, 1e-05
    %v73 = vadd.f32 %v71, 1e-05
    %v74 = vrsqrt.pop %v72
    %v75 = vrsqrt.pop %v73
    %v76 = vmul.f32 %v60, %v74
    %v77 = vmul.f32 %v61, %v75
    %v79 = vlaneseq
    %v80 = vshrl.u32 %v79, 7
    %v81 = vsub.s32 0, %v80
    %v82 = vrot.slane %v48, %v81
    %v84 = vmul.f32 %v76, %v82
    %v85 = vmul.f32 %v77, %v82
    %v87 = vlaneseq
    %v88 = vshrl.u32 %v87, 7
    %v89 = vsub.s32 0, %v88
    %v90 = vrot.slane %v49, %v89
    %v92 = vadd.f32 %v84, %v90
    %v93 = vadd.f32 %v85, %v90
    %v94 = vpack.c.bf16 %v93, %v92
    %v95 = vld [vmem:[%s1] sm:$0xf]
    %v96 = vld [vmem:[%s1 + $0x4] sm:$0xf]
    %v97 = vld [vmem:[%s1 + $0x8] sm:$0xf]
    %v98 = vld [vmem:[%s1 + $0xc] sm:$0xf]
    %v99 = vld [vmem:[%s2] sm:$0x1]
    %v101 = vlaneseq
    %v102 = vshrl.u32 %v101, 7
    %v103 = vsub.s32 0, %v102
    %v104 = vrot.slane %v99, %v103
    %v110 = vunpack.c.l.b16 %v95
    %v111 = vunpack.c.l.b16 %v96
    %v112 = vunpack.c.l.b16 %v97
    %v113 = vunpack.c.l.b16 %v98
    %v114 = vpack.c.b16 %v111, %v110
    %v115 = vpack.c.b16 %v113, %v112
    %v119 = vsel %vm50, %v94, 0
    %121 = vmatprep.subr.bf16.mxu0 0
    %122 = vmatpush1.bf16.msra.mxu0 %v114
    %123 = vmatprep.subr.bf16.mxu0 0
    %124 = vmatpush1.bf16.msra.mxu0 %v115
    %125 = vmatprep.subr.bf16.mxu0 0
    %126 = vmatpush1.bf16.msra.mxu0 0
    %127 = vmatprep.subr.bf16.mxu0 0
    %128 = vmatpush1.bf16.msra.mxu0 0
    %129 = vmatprep.subr.bf16.mxu0 0
    %130 = vmatpush1.bf16.msra.mxu0 0
    %131 = vmatprep.subr.bf16.mxu0 0
    %132 = vmatpush1.bf16.msra.mxu0 0
    %133 = vmatprep.subr.bf16.mxu0 0
    %134 = vmatpush1.bf16.msra.mxu0 0
    %135 = vmatprep.subr.bf16.mxu0 0
    %136 = vmatpush1.bf16.msra.mxu0 0
    %137 = vmatprep.subr.bf16.mxu0 0
    %138 = vmatpush1.bf16.msra.mxu0 0
    %139 = vmatprep.subr.bf16.mxu0 0
    %140 = vmatpush1.bf16.msra.mxu0 0
    %141 = vmatprep.subr.bf16.mxu0 0
    %142 = vmatpush1.bf16.msra.mxu0 0
    %143 = vmatprep.subr.bf16.mxu0 0
    %144 = vmatpush1.bf16.msra.mxu0 0
    %145 = vmatprep.subr.bf16.mxu0 0
    %146 = vmatpush1.bf16.msra.mxu0 0
    %147 = vmatprep.subr.bf16.mxu0 0
    %148 = vmatpush1.bf16.msra.mxu0 0
    %149 = vmatprep.subr.bf16.mxu0 0
    %150 = vmatpush1.bf16.msra.mxu0 0
    %151 = vmatprep.subr.bf16.mxu0 0
    %152 = vmatpush1.bf16.msra.mxu0 0
    %153 = vmatprep.mubr.bf16.mxu0 0
    %154 = vmatmul.mubr.bf16.gmra.mrb[0].mxu0 %v119
    %v155 = vpop.f32.mrb[0].mxu0
    %v156 = vadd.f32 %v104, %v155
    %v157 = vpop.f32.mrb[0].mxu0
    %v158 = vpop.f32.mrb[0].mxu0
    %v159 = vadd.f32 %v104, %v158
    %v160 = vpop.f32.mrb[0].mxu0
    %161 = vdwg.mxu0
    %v162 = vpack.c.bf16 %v156, %v156
    %v163 = vpack.c.bf16 %v159, %v159
    %165 = vrot.lane.b32.xlu0 %v162, 96
    %v166 = vpop.permute.xlu0 %165
    %vm167 = vcmask 64512
    %v169 = vsel %vm167, %v162, 0
    %v172 = vsel %vm167, %v166, 0
    %174 = vmatprep.subr.bf16.mxu0 0
    %175 = vmatpush1.bf16.xpose.msra.mxu0 %v172
    %176 = vmatprep.subr.bf16.mxu0 0
    %177 = vmatpush1.bf16.xpose.msra.mxu0 0
    %178 = vmatprep.subr.bf16.mxu0 0
    %179 = vmatpush1.bf16.xpose.msra.mxu0 0
    %180 = vmatprep.subr.bf16.mxu0 0
    %181 = vmatpush1.bf16.xpose.msra.mxu0 0
    %182 = vmatprep.subr.bf16.mxu0 0
    %183 = vmatpush1.bf16.xpose.msra.mxu0 0
    %184 = vmatprep.subr.bf16.mxu0 0
    %185 = vmatpush1.bf16.xpose.msra.mxu0 0
    %186 = vmatprep.subr.bf16.mxu0 0
    %187 = vmatpush1.bf16.xpose.msra.mxu0 0
    %188 = vmatprep.subr.bf16.mxu0 0
    %189 = vmatpush1.bf16.xpose.msra.mxu0 0
    %190 = vmatprep.subr.bf16.mxu0 0
    %191 = vmatpush1.bf16.xpose.msra.mxu0 0
    %192 = vmatprep.subr.bf16.mxu0 0
    %193 = vmatpush1.bf16.xpose.msra.mxu0 0
    %194 = vmatprep.subr.bf16.mxu0 0
    %195 = vmatpush1.bf16.xpose.msra.mxu0 0
    %196 = vmatprep.subr.bf16.mxu0 0
    %197 = vmatpush1.bf16.xpose.msra.mxu0 0
    %198 = vmatprep.subr.bf16.mxu0 0
    %199 = vmatpush1.bf16.xpose.msra.mxu0 0
    %200 = vmatprep.subr.bf16.mxu0 0
    %201 = vmatpush1.bf16.xpose.msra.mxu0 0
    %202 = vmatprep.subr.bf16.mxu0 0
    %203 = vmatpush1.bf16.xpose.msra.mxu0 0
    %204 = vmatprep.subr.bf16.mxu0 0
    %205 = vmatpush1.bf16.xpose.msra.mxu0 0
    %206 = vmatprep.mubr.bf16.mxu0 0
    %207 = vmatmul.mubr.bf16.gmra.mrb[0].mxu0 %v169
    %v208 = vpop.f32.mrb[0].mxu0
    %v209 = vadd.f32 0.0, %v208
    %v210 = vpop.f32.mrb[0].mxu0
    %v211 = vpop.f32.mrb[0].mxu0
    %v212 = vpop.f32.mrb[0].mxu0
    %213 = vdwg.mxu0
    %215 = vrot.lane.b32.xlu0 %v163, 96
    %v216 = vpop.permute.xlu0 %215
    %v218 = vsel %vm167, %v163, 0
    %v221 = vsel %vm167, %v216, 0
    %223 = vmatprep.subr.bf16.mxu0 0
    %224 = vmatpush1.bf16.xpose.msra.mxu0 %v221
    %225 = vmatprep.subr.bf16.mxu0 0
    %226 = vmatpush1.bf16.xpose.msra.mxu0 0
    %227 = vmatprep.subr.bf16.mxu0 0
    %228 = vmatpush1.bf16.xpose.msra.mxu0 0
    %229 = vmatprep.subr.bf16.mxu0 0
    %230 = vmatpush1.bf16.xpose.msra.mxu0 0
    %231 = vmatprep.subr.bf16.mxu0 0
    %232 = vmatpush1.bf16.xpose.msra.mxu0 0
    %233 = vmatprep.subr.bf16.mxu0 0
    %234 = vmatpush1.bf16.xpose.msra.mxu0 0
    %235 = vmatprep.subr.bf16.mxu0 0
    %236 = vmatpush1.bf16.xpose.msra.mxu0 0
    %237 = vmatprep.subr.bf16.mxu0 0
    %238 = vmatpush1.bf16.xpose.msra.mxu0 0
    %239 = vmatprep.subr.bf16.mxu0 0
    %240 = vmatpush1.bf16.xpose.msra.mxu0 0
    %241 = vmatprep.subr.bf16.mxu0 0
    %242 = vmatpush1.bf16.xpose.msra.mxu0 0
    %243 = vmatprep.subr.bf16.mxu0 0
    %244 = vmatpush1.bf16.xpose.msra.mxu0 0
    %245 = vmatprep.subr.bf16.mxu0 0
    %246 = vmatpush1.bf16.xpose.msra.mxu0 0
    %247 = vmatprep.subr.bf16.mxu0 0
    %248 = vmatpush1.bf16.xpose.msra.mxu0 0
    %249 = vmatprep.subr.bf16.mxu0 0
    %250 = vmatpush1.bf16.xpose.msra.mxu0 0
    %251 = vmatprep.subr.bf16.mxu0 0
    %252 = vmatpush1.bf16.xpose.msra.mxu0 0
    %253 = vmatprep.subr.bf16.mxu0 0
    %254 = vmatpush1.bf16.xpose.msra.mxu0 0
    %255 = vmatprep.mubr.bf16.mxu0 0
    %256 = vmatmul.mubr.bf16.gmra.mrb[0].mxu0 %v218
    %v257 = vpop.f32.mrb[0].mxu0
    %v258 = vadd.f32 0.0, %v257
    %v259 = vpop.f32.mrb[0].mxu0
    %v260 = vpop.f32.mrb[0].mxu0
    %v261 = vpop.f32.mrb[0].mxu0
    %262 = vdwg.mxu0
    %v263 = vsel %vm167, %v209, -inf
    %264 = vmax.xlane.f32.xlu0 %v263
    %v265 = vpop.xlane.xlu0 %264
    %v266 = vsel %vm167, %v258, -inf
    %267 = vmax.xlane.f32.xlu0 %v266
    %v268 = vpop.xlane.xlu0 %267
    %v269 = vsub.f32 %v209, %v265
    %v270 = vsub.f32 %v258, %v268
    %v271 = vmul.f32 %v269, 1.442695
    %v272 = vpow.pop %v271
    %v273 = vmul.f32 %v270, 1.442695
    %v274 = vpow.pop %v273
    %v275 = vsel %vm167, %v272, 0.0
    %276 = vadd.xlane.f32.xlu0 %v275
    %v277 = vpop.xlane.xlu0 %276
    %v278 = vsel %vm167, %v274, 0.0
    %279 = vadd.xlane.f32.xlu0 %v278
    %v280 = vpop.xlane.xlu0 %279
    %v281 = vrcp.pop %v277
    %v282 = vrcp.pop %v280
    %v283 = vmul.f32 %v272, %v281
    %v284 = vmul.f32 %v274, %v282
    %v285 = vpack.c.bf16 %v283, %v283
    %v286 = vpack.c.bf16 %v284, %v284
    %287 = vrot.lane.b32.xlu0 %v162, 64
    %v288 = vpop.permute.xlu0 %287
    %v290 = vsel %vm167, %v285, 0
    %vm292 = vcmask 1043456
    %v294 = vsel %vm292, %v288, 0
    %296 = vmatprep.subr.bf16.mxu0 0
    %297 = vmatpush1.bf16.msra.mxu0 %v294
    %298 = vmatprep.subr.bf16.mxu0 0
    %299 = vmatpush1.bf16.msra.mxu0 0
    %300 = vmatprep.subr.bf16.mxu0 0
    %301 = vmatpush1.bf16.msra.mxu0 0
    %302 = vmatprep.subr.bf16.mxu0 0
    %303 = vmatpush1.bf16.msra.mxu0 0
    %304 = vmatprep.subr.bf16.mxu0 0
    %305 = vmatpush1.bf16.msra.mxu0 0
    %306 = vmatprep.subr.bf16.mxu0 0
    %307 = vmatpush1.bf16.msra.mxu0 0
    %308 = vmatprep.subr.bf16.mxu0 0
    %309 = vmatpush1.bf16.msra.mxu0 0
    %310 = vmatprep.subr.bf16.mxu0 0
    %311 = vmatpush1.bf16.msra.mxu0 0
    %312 = vmatprep.subr.bf16.mxu0 0
    %313 = vmatpush1.bf16.msra.mxu0 0
    %314 = vmatprep.subr.bf16.mxu0 0
    %315 = vmatpush1.bf16.msra.mxu0 0
    %316 = vmatprep.subr.bf16.mxu0 0
    %317 = vmatpush1.bf16.msra.mxu0 0
    %318 = vmatprep.subr.bf16.mxu0 0
    %319 = vmatpush1.bf16.msra.mxu0 0
    %320 = vmatprep.subr.bf16.mxu0 0
    %321 = vmatpush1.bf16.msra.mxu0 0
    %322 = vmatprep.subr.bf16.mxu0 0
    %323 = vmatpush1.bf16.msra.mxu0 0
    %324 = vmatprep.subr.bf16.mxu0 0
    %325 = vmatpush1.bf16.msra.mxu0 0
    %326 = vmatprep.subr.bf16.mxu0 0
    %327 = vmatpush1.bf16.msra.mxu0 0
    %328 = vmatprep.mubr.bf16.mxu0 0
    %329 = vmatmul.mubr.bf16.gmra.mrb[0].mxu0 %v290
    %v330 = vpop.f32.mrb[0].mxu0
    %v331 = vadd.f32 0.0, %v330
    %v332 = vpop.f32.mrb[0].mxu0
    %v333 = vpop.f32.mrb[0].mxu0
    %v334 = vpop.f32.mrb[0].mxu0
    %335 = vdwg.mxu0
    %336 = vrot.lane.b32.xlu0 %v163, 64
    %v337 = vpop.permute.xlu0 %336
    %v339 = vsel %vm167, %v286, 0
    %v342 = vsel %vm292, %v337, 0
    %344 = vmatprep.subr.bf16.mxu0 0
    %345 = vmatpush1.bf16.msra.mxu0 %v342
    %346 = vmatprep.subr.bf16.mxu0 0
    %347 = vmatpush1.bf16.msra.mxu0 0
    %348 = vmatprep.subr.bf16.mxu0 0
    %349 = vmatpush1.bf16.msra.mxu0 0
    %350 = vmatprep.subr.bf16.mxu0 0
    %351 = vmatpush1.bf16.msra.mxu0 0
    %352 = vmatprep.subr.bf16.mxu0 0
    %353 = vmatpush1.bf16.msra.mxu0 0
    %354 = vmatprep.subr.bf16.mxu0 0
    %355 = vmatpush1.bf16.msra.mxu0 0
    %356 = vmatprep.subr.bf16.mxu0 0
    %357 = vmatpush1.bf16.msra.mxu0 0
    %358 = vmatprep.subr.bf16.mxu0 0
    %359 = vmatpush1.bf16.msra.mxu0 0
    %360 = vmatprep.subr.bf16.mxu0 0
    %361 = vmatpush1.bf16.msra.mxu0 0
    %362 = vmatprep.subr.bf16.mxu0 0
    %363 = vmatpush1.bf16.msra.mxu0 0
    %364 = vmatprep.subr.bf16.mxu0 0
    %365 = vmatpush1.bf16.msra.mxu0 0
    %366 = vmatprep.subr.bf16.mxu0 0
    %367 = vmatpush1.bf16.msra.mxu0 0
    %368 = vmatprep.subr.bf16.mxu0 0
    %369 = vmatpush1.bf16.msra.mxu0 0
    %370 = vmatprep.subr.bf16.mxu0 0
    %371 = vmatpush1.bf16.msra.mxu0 0
    %372 = vmatprep.subr.bf16.mxu0 0
    %373 = vmatpush1.bf16.msra.mxu0 0
    %374 = vmatprep.subr.bf16.mxu0 0
    %375 = vmatpush1.bf16.msra.mxu0 0
    %376 = vmatprep.mubr.bf16.mxu0 0
    %377 = vmatmul.mubr.bf16.gmra.mrb[0].mxu0 %v339
    %v378 = vpop.f32.mrb[0].mxu0
    %v379 = vadd.f32 0.0, %v378
    %v380 = vpop.f32.mrb[0].mxu0
    %v381 = vpop.f32.mrb[0].mxu0
    %v382 = vpop.f32.mrb[0].mxu0
    %383 = vdwg.mxu0
    %384 = vrot.lane.b32.xlu0 %v162, 120
    %v385 = vpop.permute.xlu0 %384
    %386 = vrot.lane.b32.xlu0 %v162, 88
    %v387 = vpop.permute.xlu0 %386
    %v389 = vsel %vm167, %v385, 0
    %v392 = vsel %vm167, %v387, 0
    %394 = vmatprep.subr.bf16.mxu0 0
    %395 = vmatpush1.bf16.xpose.msra.mxu0 %v392
    %396 = vmatprep.subr.bf16.mxu0 0
    %397 = vmatpush1.bf16.xpose.msra.mxu0 0
    %398 = vmatprep.subr.bf16.mxu0 0
    %399 = vmatpush1.bf16.xpose.msra.mxu0 0
    %400 = vmatprep.subr.bf16.mxu0 0
    %401 = vmatpush1.bf16.xpose.msra.mxu0 0
    %402 = vmatprep.subr.bf16.mxu0 0
    %403 = vmatpush1.bf16.xpose.msra.mxu0 0
    %404 = vmatprep.subr.bf16.mxu0 0
    %405 = vmatpush1.bf16.xpose.msra.mxu0 0
    %406 = vmatprep.subr.bf16.mxu0 0
    %407 = vmatpush1.bf16.xpose.msra.mxu0 0
    %408 = vmatprep.subr.bf16.mxu0 0
    %409 = vmatpush1.bf16.xpose.msra.mxu0 0
    %410 = vmatprep.subr.bf16.mxu0 0
    %411 = vmatpush1.bf16.xpose.msra.mxu0 0
    %412 = vmatprep.subr.bf16.mxu0 0
    %413 = vmatpush1.bf16.xpose.msra.mxu0 0
    %414 = vmatprep.subr.bf16.mxu0 0
    %415 = vmatpush1.bf16.xpose.msra.mxu0 0
    %416 = vmatprep.subr.bf16.mxu0 0
    %417 = vmatpush1.bf16.xpose.msra.mxu0 0
    %418 = vmatprep.subr.bf16.mxu0 0
    %419 = vmatpush1.bf16.xpose.msra.mxu0 0
    %420 = vmatprep.subr.bf16.mxu0 0
    %421 = vmatpush1.bf16.xpose.msra.mxu0 0
    %422 = vmatprep.subr.bf16.mxu0 0
    %423 = vmatpush1.bf16.xpose.msra.mxu0 0
    %424 = vmatprep.subr.bf16.mxu0 0
    %425 = vmatpush1.bf16.xpose.msra.mxu0 0
    %426 = vmatprep.mubr.bf16.mxu0 0
    %427 = vmatmul.mubr.bf16.gmra.mrb[0].mxu0 %v389
    %v428 = vpop.f32.mrb[0].mxu0
    %v429 = vadd.f32 0.0, %v428
    %v430 = vpop.f32.mrb[0].mxu0
    %v431 = vpop.f32.mrb[0].mxu0
    %v432 = vpop.f32.mrb[0].mxu0
    %433 = vdwg.mxu0
    %434 = vrot.lane.b32.xlu0 %v163, 120
    %v435 = vpop.permute.xlu0 %434
    %436 = vrot.lane.b32.xlu0 %v163, 88
    %v437 = vpop.permute.xlu0 %436
    %v439 = vsel %vm167, %v435, 0
    %v442 = vsel %vm167, %v437, 0
    %444 = vmatprep.subr.bf16.mxu0 0
    %445 = vmatpush1.bf16.xpose.msra.mxu0 %v442
    %446 = vmatprep.subr.bf16.mxu0 0
    %447 = vmatpush1.bf16.xpose.msra.mxu0 0
    %448 = vmatprep.subr.bf16.mxu0 0
    %449 = vmatpush1.bf16.xpose.msra.mxu0 0
    %450 = vmatprep.subr.bf16.mxu0 0
    %451 = vmatpush1.bf16.xpose.msra.mxu0 0
    %452 = vmatprep.subr.bf16.mxu0 0
    %453 = vmatpush1.bf16.xpose.msra.mxu0 0
    %454 = vmatprep.subr.bf16.mxu0 0
    %455 = vmatpush1.bf16.xpose.msra.mxu0 0
    %456 = vmatprep.subr.bf16.mxu0 0
    %457 = vmatpush1.bf16.xpose.msra.mxu0 0
    %458 = vmatprep.subr.bf16.mxu0 0
    %459 = vmatpush1.bf16.xpose.msra.mxu0 0
    %460 = vmatprep.subr.bf16.mxu0 0
    %461 = vmatpush1.bf16.xpose.msra.mxu0 0
    %462 = vmatprep.subr.bf16.mxu0 0
    %463 = vmatpush1.bf16.xpose.msra.mxu0 0
    %464 = vmatprep.subr.bf16.mxu0 0
    %465 = vmatpush1.bf16.xpose.msra.mxu0 0
    %466 = vmatprep.subr.bf16.mxu0 0
    %467 = vmatpush1.bf16.xpose.msra.mxu0 0
    %468 = vmatprep.subr.bf16.mxu0 0
    %469 = vmatpush1.bf16.xpose.msra.mxu0 0
    %470 = vmatprep.subr.bf16.mxu0 0
    %471 = vmatpush1.bf16.xpose.msra.mxu0 0
    %472 = vmatprep.subr.bf16.mxu0 0
    %473 = vmatpush1.bf16.xpose.msra.mxu0 0
    %474 = vmatprep.subr.bf16.mxu0 0
    %475 = vmatpush1.bf16.xpose.msra.mxu0 0
    %476 = vmatprep.mubr.bf16.mxu0 0
    %477 = vmatmul.mubr.bf16.gmra.mrb[0].mxu0 %v439
    %v478 = vpop.f32.mrb[0].mxu0
    %v479 = vadd.f32 0.0, %v478
    %v480 = vpop.f32.mrb[0].mxu0
    %v481 = vpop.f32.mrb[0].mxu0
    %v482 = vpop.f32.mrb[0].mxu0
    %483 = vdwg.mxu0
    %v484 = vsel %vm167, %v429, -inf
    %485 = vmax.xlane.f32.xlu0 %v484
    %v486 = vpop.xlane.xlu0 %485
    %v487 = vsel %vm167, %v479, -inf
    %488 = vmax.xlane.f32.xlu0 %v487
    %v489 = vpop.xlane.xlu0 %488
    %v490 = vsub.f32 %v429, %v486
    %v491 = vsub.f32 %v479, %v489
    %v492 = vmul.f32 %v490, 1.442695
    %v493 = vpow.pop %v492
    %v494 = vmul.f32 %v491, 1.442695
    %v495 = vpow.pop %v494
    %v496 = vsel %vm167, %v493, 0.0
    %497 = vadd.xlane.f32.xlu0 %v496
    %v498 = vpop.xlane.xlu0 %497
    %v499 = vsel %vm167, %v495, 0.0
    %500 = vadd.xlane.f32.xlu0 %v499
    %v501 = vpop.xlane.xlu0 %500
    %v502 = vrcp.pop %v498
    %v503 = vrcp.pop %v501
    %v504 = vmul.f32 %v493, %v502
    %v505 = vmul.f32 %v495, %v503
    %v506 = vpack.c.bf16 %v504, %v504
    %v507 = vpack.c.bf16 %v505, %v505
    %508 = vrot.lane.b32.xlu0 %v162, 56
    %v509 = vpop.permute.xlu0 %508
    %v511 = vsel %vm167, %v506, 0
    %v514 = vsel %vm292, %v509, 0
    %516 = vmatprep.subr.bf16.mxu0 0
    %517 = vmatpush1.bf16.msra.mxu0 %v514
    %518 = vmatprep.subr.bf16.mxu0 0
    %519 = vmatpush1.bf16.msra.mxu0 0
    %520 = vmatprep.subr.bf16.mxu0 0
    %521 = vmatpush1.bf16.msra.mxu0 0
    %522 = vmatprep.subr.bf16.mxu0 0
    %523 = vmatpush1.bf16.msra.mxu0 0
    %524 = vmatprep.subr.bf16.mxu0 0
    %525 = vmatpush1.bf16.msra.mxu0 0
    %526 = vmatprep.subr.bf16.mxu0 0
    %527 = vmatpush1.bf16.msra.mxu0 0
    %528 = vmatprep.subr.bf16.mxu0 0
    %529 = vmatpush1.bf16.msra.mxu0 0
    %530 = vmatprep.subr.bf16.mxu0 0
    %531 = vmatpush1.bf16.msra.mxu0 0
    %532 = vmatprep.subr.bf16.mxu0 0
    %533 = vmatpush1.bf16.msra.mxu0 0
    %534 = vmatprep.subr.bf16.mxu0 0
    %535 = vmatpush1.bf16.msra.mxu0 0
    %536 = vmatprep.subr.bf16.mxu0 0
    %537 = vmatpush1.bf16.msra.mxu0 0
    %538 = vmatprep.subr.bf16.mxu0 0
    %539 = vmatpush1.bf16.msra.mxu0 0
    %540 = vmatprep.subr.bf16.mxu0 0
    %541 = vmatpush1.bf16.msra.mxu0 0
    %542 = vmatprep.subr.bf16.mxu0 0
    %543 = vmatpush1.bf16.msra.mxu0 0
    %544 = vmatprep.subr.bf16.mxu0 0
    %545 = vmatpush1.bf16.msra.mxu0 0
    %546 = vmatprep.subr.bf16.mxu0 0
    %547 = vmatpush1.bf16.msra.mxu0 0
    %548 = vmatprep.mubr.bf16.mxu0 0
    %549 = vmatmul.mubr.bf16.gmra.mrb[0].mxu0 %v511
    %v550 = vpop.f32.mrb[0].mxu0
    %v551 = vadd.f32 0.0, %v550
    %v552 = vpop.f32.mrb[0].mxu0
    %v553 = vpop.f32.mrb[0].mxu0
    %v554 = vpop.f32.mrb[0].mxu0
    %555 = vdwg.mxu0
    %556 = vrot.lane.b32.xlu0 %v163, 56
    %v557 = vpop.permute.xlu0 %556
    %v559 = vsel %vm167, %v507, 0
    %v562 = vsel %vm292, %v557, 0
    %564 = vmatprep.subr.bf16.mxu0 0
    %565 = vmatpush1.bf16.msra.mxu0 %v562
    %566 = vmatprep.subr.bf16.mxu0 0
    %567 = vmatpush1.bf16.msra.mxu0 0
    %568 = vmatprep.subr.bf16.mxu0 0
    %569 = vmatpush1.bf16.msra.mxu0 0
    %570 = vmatprep.subr.bf16.mxu0 0
    %571 = vmatpush1.bf16.msra.mxu0 0
    %572 = vmatprep.subr.bf16.mxu0 0
    %573 = vmatpush1.bf16.msra.mxu0 0
    %574 = vmatprep.subr.bf16.mxu0 0
    %575 = vmatpush1.bf16.msra.mxu0 0
    %576 = vmatprep.subr.bf16.mxu0 0
    %577 = vmatpush1.bf16.msra.mxu0 0
    %578 = vmatprep.subr.bf16.mxu0 0
    %579 = vmatpush1.bf16.msra.mxu0 0
    %580 = vmatprep.subr.bf16.mxu0 0
    %581 = vmatpush1.bf16.msra.mxu0 0
    %582 = vmatprep.subr.bf16.mxu0 0
    %583 = vmatpush1.bf16.msra.mxu0 0
    %584 = vmatprep.subr.bf16.mxu0 0
    %585 = vmatpush1.bf16.msra.mxu0 0
    %586 = vmatprep.subr.bf16.mxu0 0
    %587 = vmatpush1.bf16.msra.mxu0 0
    %588 = vmatprep.subr.bf16.mxu0 0
    %589 = vmatpush1.bf16.msra.mxu0 0
    %590 = vmatprep.subr.bf16.mxu0 0
    %591 = vmatpush1.bf16.msra.mxu0 0
    %592 = vmatprep.subr.bf16.mxu0 0
    %593 = vmatpush1.bf16.msra.mxu0 0
    %594 = vmatprep.subr.bf16.mxu0 0
    %595 = vmatpush1.bf16.msra.mxu0 0
    %596 = vmatprep.mubr.bf16.mxu0 0
    %597 = vmatmul.mubr.bf16.gmra.mrb[0].mxu0 %v559
    %v598 = vpop.f32.mrb[0].mxu0
    %v599 = vadd.f32 0.0, %v598
    %v600 = vpop.f32.mrb[0].mxu0
    %v601 = vpop.f32.mrb[0].mxu0
    %v602 = vpop.f32.mrb[0].mxu0
    %603 = vdwg.mxu0
    %604 = vrot.lane.b32.xlu0 %v162, 112
    %v605 = vpop.permute.xlu0 %604
    %606 = vrot.lane.b32.xlu0 %v162, 80
    %v607 = vpop.permute.xlu0 %606
    %v609 = vsel %vm167, %v605, 0
    %v612 = vsel %vm167, %v607, 0
    %614 = vmatprep.subr.bf16.mxu0 0
    %615 = vmatpush1.bf16.xpose.msra.mxu0 %v612
    %616 = vmatprep.subr.bf16.mxu0 0
    %617 = vmatpush1.bf16.xpose.msra.mxu0 0
    %618 = vmatprep.subr.bf16.mxu0 0
    %619 = vmatpush1.bf16.xpose.msra.mxu0 0
    %620 = vmatprep.subr.bf16.mxu0 0
    %621 = vmatpush1.bf16.xpose.msra.mxu0 0
    %622 = vmatprep.subr.bf16.mxu0 0
    %623 = vmatpush1.bf16.xpose.msra.mxu0 0
    %624 = vmatprep.subr.bf16.mxu0 0
    %625 = vmatpush1.bf16.xpose.msra.mxu0 0
    %626 = vmatprep.subr.bf16.mxu0 0
    %627 = vmatpush1.bf16.xpose.msra.mxu0 0
    %628 = vmatprep.subr.bf16.mxu0 0
    %629 = vmatpush1.bf16.xpose.msra.mxu0 0
    %630 = vmatprep.subr.bf16.mxu0 0
    %631 = vmatpush1.bf16.xpose.msra.mxu0 0
    %632 = vmatprep.subr.bf16.mxu0 0
    %633 = vmatpush1.bf16.xpose.msra.mxu0 0
    %634 = vmatprep.subr.bf16.mxu0 0
    %635 = vmatpush1.bf16.xpose.msra.mxu0 0
    %636 = vmatprep.subr.bf16.mxu0 0
    %637 = vmatpush1.bf16.xpose.msra.mxu0 0
    %638 = vmatprep.subr.bf16.mxu0 0
    %639 = vmatpush1.bf16.xpose.msra.mxu0 0
    %640 = vmatprep.subr.bf16.mxu0 0
    %641 = vmatpush1.bf16.xpose.msra.mxu0 0
    %642 = vmatprep.subr.bf16.mxu0 0
    %643 = vmatpush1.bf16.xpose.msra.mxu0 0
    %644 = vmatprep.subr.bf16.mxu0 0
    %645 = vmatpush1.bf16.xpose.msra.mxu0 0
    %646 = vmatprep.mubr.bf16.mxu0 0
    %647 = vmatmul.mubr.bf16.gmra.mrb[0].mxu0 %v609
    %v648 = vpop.f32.mrb[0].mxu0
    %v649 = vadd.f32 0.0, %v648
    %v650 = vpop.f32.mrb[0].mxu0
    %v651 = vpop.f32.mrb[0].mxu0
    %v652 = vpop.f32.mrb[0].mxu0
    %653 = vdwg.mxu0
    %654 = vrot.lane.b32.xlu0 %v163, 112
    %v655 = vpop.permute.xlu0 %654
    %656 = vrot.lane.b32.xlu0 %v163, 80
    %v657 = vpop.permute.xlu0 %656
    %v659 = vsel %vm167, %v655, 0
    %v662 = vsel %vm167, %v657, 0
    %664 = vmatprep.subr.bf16.mxu0 0
    %665 = vmatpush1.bf16.xpose.msra.mxu0 %v662
    %666 = vmatprep.subr.bf16.mxu0 0
    %667 = vmatpush1.bf16.xpose.msra.mxu0 0
    %668 = vmatprep.subr.bf16.mxu0 0
    %669 = vmatpush1.bf16.xpose.msra.mxu0 0
    %670 = vmatprep.subr.bf16.mxu0 0
    %671 = vmatpush1.bf16.xpose.msra.mxu0 0
    %672 = vmatprep.subr.bf16.mxu0 0
    %673 = vmatpush1.bf16.xpose.msra.mxu0 0
    %674 = vmatprep.subr.bf16.mxu0 0
    %675 = vmatpush1.bf16.xpose.msra.mxu0 0
    %676 = vmatprep.subr.bf16.mxu0 0
    %677 = vmatpush1.bf16.xpose.msra.mxu0 0
    %678 = vmatprep.subr.bf16.mxu0 0
    %679 = vmatpush1.bf16.xpose.msra.mxu0 0
    %680 = vmatprep.subr.bf16.mxu0 0
    %681 = vmatpush1.bf16.xpose.msra.mxu0 0
    %682 = vmatprep.subr.bf16.mxu0 0
    %683 = vmatpush1.bf16.xpose.msra.mxu0 0
    %684 = vmatprep.subr.bf16.mxu0 0
    %685 = vmatpush1.bf16.xpose.msra.mxu0 0
    %686 = vmatprep.subr.bf16.mxu0 0
    %687 = vmatpush1.bf16.xpose.msra.mxu0 0
    %688 = vmatprep.subr.bf16.mxu0 0
    %689 = vmatpush1.bf16.xpose.msra.mxu0 0
    %690 = vmatprep.subr.bf16.mxu0 0
    %691 = vmatpush1.bf16.xpose.msra.mxu0 0
    %692 = vmatprep.subr.bf16.mxu0 0
    %693 = vmatpush1.bf16.xpose.msra.mxu0 0
    %694 = vmatprep.subr.bf16.mxu0 0
    %695 = vmatpush1.bf16.xpose.msra.mxu0 0
    %696 = vmatprep.mubr.bf16.mxu0 0
    %697 = vmatmul.mubr.bf16.gmra.mrb[0].mxu0 %v659
    %v698 = vpop.f32.mrb[0].mxu0
    %v699 = vadd.f32 0.0, %v698
    %v700 = vpop.f32.mrb[0].mxu0
    %v701 = vpop.f32.mrb[0].mxu0
    %v702 = vpop.f32.mrb[0].mxu0
    %703 = vdwg.mxu0
    %v704 = vsel %vm167, %v649, -inf
    %705 = vmax.xlane.f32.xlu0 %v704
    %v706 = vpop.xlane.xlu0 %705
    %v707 = vsel %vm167, %v699, -inf
    %708 = vmax.xlane.f32.xlu0 %v707
    %v709 = vpop.xlane.xlu0 %708
    %v710 = vsub.f32 %v649, %v706
    %v711 = vsub.f32 %v699, %v709
    %v712 = vmul.f32 %v710, 1.442695
    %v713 = vpow.pop %v712
    %v714 = vmul.f32 %v711, 1.442695
    %v715 = vpow.pop %v714
    %v716 = vsel %vm167, %v713, 0.0
    %717 = vadd.xlane.f32.xlu0 %v716
    %v718 = vpop.xlane.xlu0 %717
    %v719 = vsel %vm167, %v715, 0.0
    %720 = vadd.xlane.f32.xlu0 %v719
    %v721 = vpop.xlane.xlu0 %720
    %v722 = vrcp.pop %v718
    %v723 = vrcp.pop %v721
    %v724 = vmul.f32 %v713, %v722
    %v725 = vmul.f32 %v715, %v723
    %v726 = vpack.c.bf16 %v724, %v724
    %v727 = vpack.c.bf16 %v725, %v725
    %728 = vrot.lane.b32.xlu0 %v162, 48
    %v729 = vpop.permute.xlu0 %728
    %v731 = vsel %vm167, %v726, 0
    %v734 = vsel %vm292, %v729, 0
    %736 = vmatprep.subr.bf16.mxu0 0
    %737 = vmatpush1.bf16.msra.mxu0 %v734
    %738 = vmatprep.subr.bf16.mxu0 0
    %739 = vmatpush1.bf16.msra.mxu0 0
    %740 = vmatprep.subr.bf16.mxu0 0
    %741 = vmatpush1.bf16.msra.mxu0 0
    %742 = vmatprep.subr.bf16.mxu0 0
    %743 = vmatpush1.bf16.msra.mxu0 0
    %744 = vmatprep.subr.bf16.mxu0 0
    %745 = vmatpush1.bf16.msra.mxu0 0
    %746 = vmatprep.subr.bf16.mxu0 0
    %747 = vmatpush1.bf16.msra.mxu0 0
    %748 = vmatprep.subr.bf16.mxu0 0
    %749 = vmatpush1.bf16.msra.mxu0 0
    %750 = vmatprep.subr.bf16.mxu0 0
    %751 = vmatpush1.bf16.msra.mxu0 0
    %752 = vmatprep.subr.bf16.mxu0 0
    %753 = vmatpush1.bf16.msra.mxu0 0
    %754 = vmatprep.subr.bf16.mxu0 0
    %755 = vmatpush1.bf16.msra.mxu0 0
    %756 = vmatprep.subr.bf16.mxu0 0
    %757 = vmatpush1.bf16.msra.mxu0 0
    %758 = vmatprep.subr.bf16.mxu0 0
    %759 = vmatpush1.bf16.msra.mxu0 0
    %760 = vmatprep.subr.bf16.mxu0 0
    %761 = vmatpush1.bf16.msra.mxu0 0
    %762 = vmatprep.subr.bf16.mxu0 0
    %763 = vmatpush1.bf16.msra.mxu0 0
    %764 = vmatprep.subr.bf16.mxu0 0
    %765 = vmatpush1.bf16.msra.mxu0 0
    %766 = vmatprep.subr.bf16.mxu0 0
    %767 = vmatpush1.bf16.msra.mxu0 0
    %768 = vmatprep.mubr.bf16.mxu0 0
    %769 = vmatmul.mubr.bf16.gmra.mrb[0].mxu0 %v731
    %v770 = vpop.f32.mrb[0].mxu0
    %v771 = vadd.f32 0.0, %v770
    %v772 = vpop.f32.mrb[0].mxu0
    %v773 = vpop.f32.mrb[0].mxu0
    %v774 = vpop.f32.mrb[0].mxu0
    %775 = vdwg.mxu0
    %776 = vrot.lane.b32.xlu0 %v163, 48
    %v777 = vpop.permute.xlu0 %776
    %v779 = vsel %vm167, %v727, 0
    %v782 = vsel %vm292, %v777, 0
    %784 = vmatprep.subr.bf16.mxu0 0
    %785 = vmatpush1.bf16.msra.mxu0 %v782
    %786 = vmatprep.subr.bf16.mxu0 0
    %787 = vmatpush1.bf16.msra.mxu0 0
    %788 = vmatprep.subr.bf16.mxu0 0
    %789 = vmatpush1.bf16.msra.mxu0 0
    %790 = vmatprep.subr.bf16.mxu0 0
    %791 = vmatpush1.bf16.msra.mxu0 0
    %792 = vmatprep.subr.bf16.mxu0 0
    %793 = vmatpush1.bf16.msra.mxu0 0
    %794 = vmatprep.subr.bf16.mxu0 0
    %795 = vmatpush1.bf16.msra.mxu0 0
    %796 = vmatprep.subr.bf16.mxu0 0
    %797 = vmatpush1.bf16.msra.mxu0 0
    %798 = vmatprep.subr.bf16.mxu0 0
    %799 = vmatpush1.bf16.msra.mxu0 0
    %800 = vmatprep.subr.bf16.mxu0 0
    %801 = vmatpush1.bf16.msra.mxu0 0
    %802 = vmatprep.subr.bf16.mxu0 0
    %803 = vmatpush1.bf16.msra.mxu0 0
    %804 = vmatprep.subr.bf16.mxu0 0
    %805 = vmatpush1.bf16.msra.mxu0 0
    %806 = vmatprep.subr.bf16.mxu0 0
    %807 = vmatpush1.bf16.msra.mxu0 0
    %808 = vmatprep.subr.bf16.mxu0 0
    %809 = vmatpush1.bf16.msra.mxu0 0
    %810 = vmatprep.subr.bf16.mxu0 0
    %811 = vmatpush1.bf16.msra.mxu0 0
    %812 = vmatprep.subr.bf16.mxu0 0
    %813 = vmatpush1.bf16.msra.mxu0 0
    %814 = vmatprep.subr.bf16.mxu0 0
    %815 = vmatpush1.bf16.msra.mxu0 0
    %816 = vmatprep.mubr.bf16.mxu0 0
    %817 = vmatmul.mubr.bf16.gmra.mrb[0].mxu0 %v779
    %v818 = vpop.f32.mrb[0].mxu0
    %v819 = vadd.f32 0.0, %v818
    %v820 = vpop.f32.mrb[0].mxu0
    %v821 = vpop.f32.mrb[0].mxu0
    %v822 = vpop.f32.mrb[0].mxu0
    %823 = vdwg.mxu0
    %824 = vrot.lane.b32.xlu0 %v162, 104
    %v825 = vpop.permute.xlu0 %824
    %826 = vrot.lane.b32.xlu0 %v162, 72
    %v827 = vpop.permute.xlu0 %826
    %v829 = vsel %vm167, %v825, 0
    %v832 = vsel %vm167, %v827, 0
    %834 = vmatprep.subr.bf16.mxu0 0
    %835 = vmatpush1.bf16.xpose.msra.mxu0 %v832
    %836 = vmatprep.subr.bf16.mxu0 0
    %837 = vmatpush1.bf16.xpose.msra.mxu0 0
    %838 = vmatprep.subr.bf16.mxu0 0
    %839 = vmatpush1.bf16.xpose.msra.mxu0 0
    %840 = vmatprep.subr.bf16.mxu0 0
    %841 = vmatpush1.bf16.xpose.msra.mxu0 0
    %842 = vmatprep.subr.bf16.mxu0 0
    %843 = vmatpush1.bf16.xpose.msra.mxu0 0
    %844 = vmatprep.subr.bf16.mxu0 0
    %845 = vmatpush1.bf16.xpose.msra.mxu0 0
    %846 = vmatprep.subr.bf16.mxu0 0
    %847 = vmatpush1.bf16.xpose.msra.mxu0 0
    %848 = vmatprep.subr.bf16.mxu0 0
    %849 = vmatpush1.bf16.xpose.msra.mxu0 0
    %850 = vmatprep.subr.bf16.mxu0 0
    %851 = vmatpush1.bf16.xpose.msra.mxu0 0
    %852 = vmatprep.subr.bf16.mxu0 0
    %853 = vmatpush1.bf16.xpose.msra.mxu0 0
    %854 = vmatprep.subr.bf16.mxu0 0
    %855 = vmatpush1.bf16.xpose.msra.mxu0 0
    %856 = vmatprep.subr.bf16.mxu0 0
    %857 = vmatpush1.bf16.xpose.msra.mxu0 0
    %858 = vmatprep.subr.bf16.mxu0 0
    %859 = vmatpush1.bf16.xpose.msra.mxu0 0
    %860 = vmatprep.subr.bf16.mxu0 0
    %861 = vmatpush1.bf16.xpose.msra.mxu0 0
    %862 = vmatprep.subr.bf16.mxu0 0
    %863 = vmatpush1.bf16.xpose.msra.mxu0 0
    %864 = vmatprep.subr.bf16.mxu0 0
    %865 = vmatpush1.bf16.xpose.msra.mxu0 0
    %866 = vmatprep.mubr.bf16.mxu0 0
    %867 = vmatmul.mubr.bf16.gmra.mrb[0].mxu0 %v829
    %v868 = vpop.f32.mrb[0].mxu0
    %v869 = vadd.f32 0.0, %v868
    %v870 = vpop.f32.mrb[0].mxu0
    %v871 = vpop.f32.mrb[0].mxu0
    %v872 = vpop.f32.mrb[0].mxu0
    %873 = vdwg.mxu0
    %874 = vrot.lane.b32.xlu0 %v163, 104
    %v875 = vpop.permute.xlu0 %874
    %876 = vrot.lane.b32.xlu0 %v163, 72
    %v877 = vpop.permute.xlu0 %876
    %v879 = vsel %vm167, %v875, 0
    %v882 = vsel %vm167, %v877, 0
    %884 = vmatprep.subr.bf16.mxu0 0
    %885 = vmatpush1.bf16.xpose.msra.mxu0 %v882
    %886 = vmatprep.subr.bf16.mxu0 0
    %887 = vmatpush1.bf16.xpose.msra.mxu0 0
    %888 = vmatprep.subr.bf16.mxu0 0
    %889 = vmatpush1.bf16.xpose.msra.mxu0 0
    %890 = vmatprep.subr.bf16.mxu0 0
    %891 = vmatpush1.bf16.xpose.msra.mxu0 0
    %892 = vmatprep.subr.bf16.mxu0 0
    %893 = vmatpush1.bf16.xpose.msra.mxu0 0
    %894 = vmatprep.subr.bf16.mxu0 0
    %895 = vmatpush1.bf16.xpose.msra.mxu0 0
    %896 = vmatprep.subr.bf16.mxu0 0
    %897 = vmatpush1.bf16.xpose.msra.mxu0 0
    %898 = vmatprep.subr.bf16.mxu0 0
    %899 = vmatpush1.bf16.xpose.msra.mxu0 0
    %900 = vmatprep.subr.bf16.mxu0 0
    %901 = vmatpush1.bf16.xpose.msra.mxu0 0
    %902 = vmatprep.subr.bf16.mxu0 0
    %903 = vmatpush1.bf16.xpose.msra.mxu0 0
    %904 = vmatprep.subr.bf16.mxu0 0
    %905 = vmatpush1.bf16.xpose.msra.mxu0 0
    %906 = vmatprep.subr.bf16.mxu0 0
    %907 = vmatpush1.bf16.xpose.msra.mxu0 0
    %908 = vmatprep.subr.bf16.mxu0 0
    %909 = vmatpush1.bf16.xpose.msra.mxu0 0
    %910 = vmatprep.subr.bf16.mxu0 0
    %911 = vmatpush1.bf16.xpose.msra.mxu0 0
    %912 = vmatprep.subr.bf16.mxu0 0
    %913 = vmatpush1.bf16.xpose.msra.mxu0 0
    %914 = vmatprep.subr.bf16.mxu0 0
    %915 = vmatpush1.bf16.xpose.msra.mxu0 0
    %916 = vmatprep.mubr.bf16.mxu0 0
    %917 = vmatmul.mubr.bf16.gmra.mrb[0].mxu0 %v879
    %v918 = vpop.f32.mrb[0].mxu0
    %v919 = vadd.f32 0.0, %v918
    %v920 = vpop.f32.mrb[0].mxu0
    %v921 = vpop.f32.mrb[0].mxu0
    %v922 = vpop.f32.mrb[0].mxu0
    %923 = vdwg.mxu0
    %v924 = vsel %vm167, %v869, -inf
    %925 = vmax.xlane.f32.xlu0 %v924
    %v926 = vpop.xlane.xlu0 %925
    %v927 = vsel %vm167, %v919, -inf
    %928 = vmax.xlane.f32.xlu0 %v927
    %v929 = vpop.xlane.xlu0 %928
    %v930 = vsub.f32 %v869, %v926
    %v931 = vsub.f32 %v919, %v929
    %v932 = vmul.f32 %v930, 1.442695
    %v933 = vpow.pop %v932
    %v934 = vmul.f32 %v931, 1.442695
    %v935 = vpow.pop %v934
    %v936 = vsel %vm167, %v933, 0.0
    %937 = vadd.xlane.f32.xlu0 %v936
    %v938 = vpop.xlane.xlu0 %937
    %v939 = vsel %vm167, %v935, 0.0
    %940 = vadd.xlane.f32.xlu0 %v939
    %v941 = vpop.xlane.xlu0 %940
    %v942 = vrcp.pop %v938
    %v943 = vrcp.pop %v941
    %v944 = vmul.f32 %v933, %v942
    %v945 = vmul.f32 %v935, %v943
    %v946 = vpack.c.bf16 %v944, %v944
    %v947 = vpack.c.bf16 %v945, %v945
    %948 = vrot.lane.b32.xlu0 %v162, 40
    %v949 = vpop.permute.xlu0 %948
    %v951 = vsel %vm167, %v946, 0
    %v954 = vsel %vm292, %v949, 0
    %956 = vmatprep.subr.bf16.mxu0 0
    %957 = vmatpush1.bf16.msra.mxu0 %v954
    %958 = vmatprep.subr.bf16.mxu0 0
    %959 = vmatpush1.bf16.msra.mxu0 0
    %960 = vmatprep.subr.bf16.mxu0 0
    %961 = vmatpush1.bf16.msra.mxu0 0
    %962 = vmatprep.subr.bf16.mxu0 0
    %963 = vmatpush1.bf16.msra.mxu0 0
    %964 = vmatprep.subr.bf16.mxu0 0
    %965 = vmatpush1.bf16.msra.mxu0 0
    %966 = vmatprep.subr.bf16.mxu0 0
    %967 = vmatpush1.bf16.msra.mxu0 0
    %968 = vmatprep.subr.bf16.mxu0 0
    %969 = vmatpush1.bf16.msra.mxu0 0
    %970 = vmatprep.subr.bf16.mxu0 0
    %971 = vmatpush1.bf16.msra.mxu0 0
    %972 = vmatprep.subr.bf16.mxu0 0
    %973 = vmatpush1.bf16.msra.mxu0 0
    %974 = vmatprep.subr.bf16.mxu0 0
    %975 = vmatpush1.bf16.msra.mxu0 0
    %976 = vmatprep.subr.bf16.mxu0 0
    %977 = vmatpush1.bf16.msra.mxu0 0
    %978 = vmatprep.subr.bf16.mxu0 0
    %979 = vmatpush1.bf16.msra.mxu0 0
    %980 = vmatprep.subr.bf16.mxu0 0
    %981 = vmatpush1.bf16.msra.mxu0 0
    %982 = vmatprep.subr.bf16.mxu0 0
    %983 = vmatpush1.bf16.msra.mxu0 0
    %984 = vmatprep.subr.bf16.mxu0 0
    %985 = vmatpush1.bf16.msra.mxu0 0
    %986 = vmatprep.subr.bf16.mxu0 0
    %987 = vmatpush1.bf16.msra.mxu0 0
    %988 = vmatprep.mubr.bf16.mxu0 0
    %989 = vmatmul.mubr.bf16.gmra.mrb[0].mxu0 %v951
    %v990 = vpop.f32.mrb[0].mxu0
    %v991 = vadd.f32 0.0, %v990
    %v992 = vpop.f32.mrb[0].mxu0
    %v993 = vpop.f32.mrb[0].mxu0
    %v994 = vpop.f32.mrb[0].mxu0
    %995 = vdwg.mxu0
    %996 = vrot.lane.b32.xlu0 %v163, 40
    %v997 = vpop.permute.xlu0 %996
    %v999 = vsel %vm167, %v947, 0
    %v1002 = vsel %vm292, %v997, 0
    %1004 = vmatprep.subr.bf16.mxu0 0
    %1005 = vmatpush1.bf16.msra.mxu0 %v1002
    %1006 = vmatprep.subr.bf16.mxu0 0
    %1007 = vmatpush1.bf16.msra.mxu0 0
    %1008 = vmatprep.subr.bf16.mxu0 0
    %1009 = vmatpush1.bf16.msra.mxu0 0
    %1010 = vmatprep.subr.bf16.mxu0 0
    %1011 = vmatpush1.bf16.msra.mxu0 0
    %1012 = vmatprep.subr.bf16.mxu0 0
    %1013 = vmatpush1.bf16.msra.mxu0 0
    %1014 = vmatprep.subr.bf16.mxu0 0
    %1015 = vmatpush1.bf16.msra.mxu0 0
    %1016 = vmatprep.subr.bf16.mxu0 0
    %1017 = vmatpush1.bf16.msra.mxu0 0
    %1018 = vmatprep.subr.bf16.mxu0 0
    %1019 = vmatpush1.bf16.msra.mxu0 0
    %1020 = vmatprep.subr.bf16.mxu0 0
    %1021 = vmatpush1.bf16.msra.mxu0 0
    %1022 = vmatprep.subr.bf16.mxu0 0
    %1023 = vmatpush1.bf16.msra.mxu0 0
    %1024 = vmatprep.subr.bf16.mxu0 0
    %1025 = vmatpush1.bf16.msra.mxu0 0
    %1026 = vmatprep.subr.bf16.mxu0 0
    %1027 = vmatpush1.bf16.msra.mxu0 0
    %1028 = vmatprep.subr.bf16.mxu0 0
    %1029 = vmatpush1.bf16.msra.mxu0 0
    %1030 = vmatprep.subr.bf16.mxu0 0
    %1031 = vmatpush1.bf16.msra.mxu0 0
    %1032 = vmatprep.subr.bf16.mxu0 0
    %1033 = vmatpush1.bf16.msra.mxu0 0
    %1034 = vmatprep.subr.bf16.mxu0 0
    %1035 = vmatpush1.bf16.msra.mxu0 0
    %1036 = vmatprep.mubr.bf16.mxu0 0
    %1037 = vmatmul.mubr.bf16.gmra.mrb[0].mxu0 %v999
    %v1038 = vpop.f32.mrb[0].mxu0
    %v1039 = vadd.f32 0.0, %v1038
    %v1040 = vpop.f32.mrb[0].mxu0
    %v1041 = vpop.f32.mrb[0].mxu0
    %v1042 = vpop.f32.mrb[0].mxu0
    %1043 = vdwg.mxu0
    %1046 = vrot.lane.b32.xlu0 %v551, 8
    %v1047 = vpop.permute.xlu0 %1046
    %1048 = vrot.lane.b32.xlu0 %v599, 8
    %v1049 = vpop.permute.xlu0 %1048
    %1054 = vrot.lane.b32.xlu0 %v771, 16
    %v1055 = vpop.permute.xlu0 %1054
    %1056 = vrot.lane.b32.xlu0 %v819, 16
    %v1057 = vpop.permute.xlu0 %1056
    %1062 = vrot.lane.b32.xlu0 %v991, 24
    %v1063 = vpop.permute.xlu0 %1062
    %1064 = vrot.lane.b32.xlu0 %v1039, 24
    %v1065 = vpop.permute.xlu0 %1064
    %v1068 = vsel %vm167, %v331, %v1047
    %v1069 = vsel %vm167, %v379, %v1049
    %vm1070 = vcmask 130048
    %v1071 = vsel %vm1070, %v1068, %v1055
    %v1072 = vsel %vm1070, %v1069, %v1057
    %vm1073 = vcmask 195584
    %v1074 = vsel %vm1073, %v1071, %v1063
    %v1075 = vsel %vm1073, %v1072, %v1065
    %v1076 = vpack.c.bf16 %v1075, %v1074
    %v1077 = vld [vmem:[%s3] sm:$0xf]
    %v1078 = vld [vmem:[%s3 + $0x4] sm:$0xf]
    %v1079 = vld [vmem:[%s3 + $0x8] sm:$0xf]
    %v1080 = vld [vmem:[%s3 + $0xc] sm:$0xf]
    %v1081 = vld [vmem:[%s4] sm:$0x1]
    %v1083 = vlaneseq
    %v1084 = vshrl.u32 %v1083, 7
    %v1085 = vsub.s32 0, %v1084
    %v1086 = vrot.slane %v1081, %v1085
    %v1092 = vunpack.c.l.b16 %v1077
    %v1093 = vunpack.c.l.b16 %v1078
    %v1094 = vunpack.c.l.b16 %v1079
    %v1095 = vunpack.c.l.b16 %v1080
    %v1096 = vpack.c.b16 %v1093, %v1092
    %v1097 = vpack.c.b16 %v1095, %v1094
    %v1101 = vsel %vm50, %v1076, 0
    %1103 = vmatprep.subr.bf16.mxu0 0
    %1104 = vmatpush1.bf16.msra.mxu0 %v1096
    %1105 = vmatprep.subr.bf16.mxu0 0
    %1106 = vmatpush1.bf16.msra.mxu0 %v1097
    %1107 = vmatprep.subr.bf16.mxu0 0
    %1108 = vmatpush1.bf16.msra.mxu0 0
    %1109 = vmatprep.subr.bf16.mxu0 0
    %1110 = vmatpush1.bf16.msra.mxu0 0
    %1111 = vmatprep.subr.bf16.mxu0 0
    %1112 = vmatpush1.bf16.msra.mxu0 0
    %1113 = vmatprep.subr.bf16.mxu0 0
    %1114 = vmatpush1.bf16.msra.mxu0 0
    %1115 = vmatprep.subr.bf16.mxu0 0
    %1116 = vmatpush1.bf16.msra.mxu0 0
    %1117 = vmatprep.subr.bf16.mxu0 0
    %1118 = vmatpush1.bf16.msra.mxu0 0
    %1119 = vmatprep.subr.bf16.mxu0 0
    %1120 = vmatpush1.bf16.msra.mxu0 0
    %1121 = vmatprep.subr.bf16.mxu0 0
    %1122 = vmatpush1.bf16.msra.mxu0 0
    %1123 = vmatprep.subr.bf16.mxu0 0
    %1124 = vmatpush1.bf16.msra.mxu0 0
    %1125 = vmatprep.subr.bf16.mxu0 0
    %1126 = vmatpush1.bf16.msra.mxu0 0
    %1127 = vmatprep.subr.bf16.mxu0 0
    %1128 = vmatpush1.bf16.msra.mxu0 0
    %1129 = vmatprep.subr.bf16.mxu0 0
    %1130 = vmatpush1.bf16.msra.mxu0 0
    %1131 = vmatprep.subr.bf16.mxu0 0
    %1132 = vmatpush1.bf16.msra.mxu0 0
    %1133 = vmatprep.subr.bf16.mxu0 0
    %1134 = vmatpush1.bf16.msra.mxu0 0
    %1135 = vmatprep.mubr.bf16.mxu0 0
    %1136 = vmatmul.mubr.bf16.gmra.mrb[0].mxu0 %v1101
    %v1137 = vpop.f32.mrb[0].mxu0
    %v1138 = vadd.f32 %v1086, %v1137
    %v1139 = vpop.f32.mrb[0].mxu0
    %v1140 = vpop.f32.mrb[0].mxu0
    %v1141 = vadd.f32 %v1086, %v1140
    %v1142 = vpop.f32.mrb[0].mxu0
    %1143 = vdwg.mxu0
    %v1144 = vadd.f32 %v46, %v1138
    %v1145 = vadd.f32 %v47, %v1141
    %v1146 = vld [vmem:[%s11] sm:$0x1]
    %v1147 = vld [vmem:[%s12] sm:$0x1]
    %v1148 = vsel %vm50, %v1144, 0.0
    %1149 = vadd.xlane.f32.xlu0 %v1148
    %v1150 = vpop.xlane.xlu0 %1149
    %v1151 = vsel %vm50, %v1145, 0.0
    %1152 = vadd.xlane.f32.xlu0 %v1151
    %v1153 = vpop.xlane.xlu0 %1152
    %v1154 = vmul.f32 %v1150, %v57
    %v1155 = vmul.f32 %v1153, %v57
    %v1156 = vsub.f32 %v1144, %v1154
    %v1157 = vsub.f32 %v1145, %v1155
    %v1158 = vmul.f32 %v1156, %v1156
    %v1159 = vmul.f32 %v1157, %v1157
    %v1160 = vsel %vm50, %v1158, 0.0
    %1161 = vadd.xlane.f32.xlu0 %v1160
    %v1162 = vpop.xlane.xlu0 %1161
    %v1163 = vsel %vm50, %v1159, 0.0
    %1164 = vadd.xlane.f32.xlu0 %v1163
    %v1165 = vpop.xlane.xlu0 %1164
    %v1166 = vmul.f32 %v1162, %v57
    %v1167 = vmul.f32 %v1165, %v57
    %v1168 = vadd.f32 %v1166, 1e-05
    %v1169 = vadd.f32 %v1167, 1e-05
    %v1170 = vrsqrt.pop %v1168
    %v1171 = vrsqrt.pop %v1169
    %v1172 = vmul.f32 %v1156, %v1170
    %v1173 = vmul.f32 %v1157, %v1171
    %v1175 = vlaneseq
    %v1176 = vshrl.u32 %v1175, 7
    %v1177 = vsub.s32 0, %v1176
    %v1178 = vrot.slane %v1146, %v1177
    %v1180 = vmul.f32 %v1172, %v1178
    %v1181 = vmul.f32 %v1173, %v1178
    %v1183 = vlaneseq
    %v1184 = vshrl.u32 %v1183, 7
    %v1185 = vsub.s32 0, %v1184
    %v1186 = vrot.slane %v1147, %v1185
    %v1188 = vadd.f32 %v1180, %v1186
    %v1189 = vadd.f32 %v1181, %v1186
    %v1190 = vpack.c.bf16 %v1189, %v1188
    %v1191 = vld [vmem:[%s5] sm:$0xf]
    %v1192 = vld [vmem:[%s5 + $0x4] sm:$0xf]
    %v1193 = vld [vmem:[%s5 + $0x8] sm:$0xf]
    %v1194 = vld [vmem:[%s5 + $0xc] sm:$0xf]
    %v1195 = vld [vmem:[%s6] sm:$0x1]
    %v1197 = vlaneseq
    %v1198 = vshrl.u32 %v1197, 7
    %v1199 = vsub.s32 0, %v1198
    %v1200 = vrot.slane %v1195, %v1199
    %v1206 = vunpack.c.l.b16 %v1191
    %v1207 = vunpack.c.l.b16 %v1192
    %v1208 = vunpack.c.l.b16 %v1193
    %v1209 = vunpack.c.l.b16 %v1194
    %v1210 = vpack.c.b16 %v1207, %v1206
    %v1211 = vpack.c.b16 %v1209, %v1208
    %v1215 = vsel %vm50, %v1190, 0
    %1217 = vmatprep.subr.bf16.mxu0 0
    %1218 = vmatpush1.bf16.msra.mxu0 %v1210
    %1219 = vmatprep.subr.bf16.mxu0 0
    %1220 = vmatpush1.bf16.msra.mxu0 %v1211
    %1221 = vmatprep.subr.bf16.mxu0 0
    %1222 = vmatpush1.bf16.msra.mxu0 0
    %1223 = vmatprep.subr.bf16.mxu0 0
    %1224 = vmatpush1.bf16.msra.mxu0 0
    %1225 = vmatprep.subr.bf16.mxu0 0
    %1226 = vmatpush1.bf16.msra.mxu0 0
    %1227 = vmatprep.subr.bf16.mxu0 0
    %1228 = vmatpush1.bf16.msra.mxu0 0
    %1229 = vmatprep.subr.bf16.mxu0 0
    %1230 = vmatpush1.bf16.msra.mxu0 0
    %1231 = vmatprep.subr.bf16.mxu0 0
    %1232 = vmatpush1.bf16.msra.mxu0 0
    %1233 = vmatprep.subr.bf16.mxu0 0
    %1234 = vmatpush1.bf16.msra.mxu0 0
    %1235 = vmatprep.subr.bf16.mxu0 0
    %1236 = vmatpush1.bf16.msra.mxu0 0
    %1237 = vmatprep.subr.bf16.mxu0 0
    %1238 = vmatpush1.bf16.msra.mxu0 0
    %1239 = vmatprep.subr.bf16.mxu0 0
    %1240 = vmatpush1.bf16.msra.mxu0 0
    %1241 = vmatprep.subr.bf16.mxu0 0
    %1242 = vmatpush1.bf16.msra.mxu0 0
    %1243 = vmatprep.subr.bf16.mxu0 0
    %1244 = vmatpush1.bf16.msra.mxu0 0
    %1245 = vmatprep.subr.bf16.mxu0 0
    %1246 = vmatpush1.bf16.msra.mxu0 0
    %1247 = vmatprep.subr.bf16.mxu0 0
    %1248 = vmatpush1.bf16.msra.mxu0 0
    %1249 = vmatprep.mubr.bf16.mxu0 0
    %1250 = vmatmul.mubr.bf16.gmra.mrb[0].mxu0 %v1215
    %v1251 = vpop.f32.mrb[0].mxu0
    %v1252 = vadd.f32 %v1200, %v1251
    %v1253 = vpop.f32.mrb[0].mxu0
    %v1254 = vpop.f32.mrb[0].mxu0
    %v1255 = vadd.f32 %v1200, %v1254
    %v1256 = vpop.f32.mrb[0].mxu0
    %1257 = vdwg.mxu0
    %v1258 = vmul.f32 %v1252, -1.702
    %v1259 = vmul.f32 %v1255, -1.702
    %v1260 = vmul.f32 %v1258, 1.442695
    %v1261 = vpow.pop %v1260
    %v1262 = vmul.f32 %v1259, 1.442695
    %v1263 = vpow.pop %v1262
    %v1264 = vadd.f32 %v1261, 1.0
    %v1265 = vadd.f32 %v1263, 1.0
    %v1266 = vrcp.pop %v1264
    %v1267 = vmul.f32 1.0, %v1266
    %v1268 = vrcp.pop %v1265
    %v1269 = vmul.f32 1.0, %v1268
    %v1270 = vmul.f32 %v1252, %v1267
    %v1271 = vmul.f32 %v1255, %v1269
    %v1272 = vpack.c.bf16 %v1271, %v1270
    %v1273 = vld [vmem:[%s7] sm:$0xf]
    %v1274 = vld [vmem:[%s7 + $0x4] sm:$0xf]
    %v1275 = vld [vmem:[%s7 + $0x8] sm:$0xf]
    %v1276 = vld [vmem:[%s7 + $0xc] sm:$0xf]
    %v1277 = vld [vmem:[%s7 + $0x10] sm:$0xf]
    %v1278 = vld [vmem:[%s7 + $0x14] sm:$0xf]
    %v1279 = vld [vmem:[%s7 + $0x18] sm:$0xf]
    %v1280 = vld [vmem:[%s7 + $0x1c] sm:$0xf]
    %v1281 = vld [vmem:[%s7 + $0x20] sm:$0xf]
    %v1282 = vld [vmem:[%s7 + $0x24] sm:$0xf]
    %v1283 = vld [vmem:[%s7 + $0x28] sm:$0xf]
    %v1284 = vld [vmem:[%s7 + $0x2c] sm:$0xf]
    %v1285 = vld [vmem:[%s7 + $0x30] sm:$0xf]
    %v1286 = vld [vmem:[%s7 + $0x34] sm:$0xf]
    %v1287 = vld [vmem:[%s7 + $0x38] sm:$0xf]
    %v1288 = vld [vmem:[%s7 + $0x3c] sm:$0xf]
    %v1289 = vld [vmem:[%s8] sm:$0x1]
    %v1291 = vlaneseq
    %v1292 = vshrl.u32 %v1291, 7
    %v1293 = vsub.s32 0, %v1292
    %v1294 = vrot.slane %v1289, %v1293
    %v1312 = vunpack.c.l.b16 %v1273
    %v1313 = vunpack.c.l.b16 %v1274
    %v1314 = vunpack.c.l.b16 %v1275
    %v1315 = vunpack.c.l.b16 %v1276
    %v1316 = vunpack.c.l.b16 %v1277
    %v1317 = vunpack.c.l.b16 %v1278
    %v1318 = vunpack.c.l.b16 %v1279
    %v1319 = vunpack.c.l.b16 %v1280
    %v1320 = vunpack.c.l.b16 %v1281
    %v1321 = vunpack.c.l.b16 %v1282
    %v1322 = vunpack.c.l.b16 %v1283
    %v1323 = vunpack.c.l.b16 %v1284
    %v1324 = vunpack.c.l.b16 %v1285
    %v1325 = vunpack.c.l.b16 %v1286
    %v1326 = vunpack.c.l.b16 %v1287
    %v1327 = vunpack.c.l.b16 %v1288
    %v1328 = vpack.c.b16 %v1313, %v1312
    %v1329 = vpack.c.b16 %v1315, %v1314
    %v1330 = vpack.c.b16 %v1317, %v1316
    %v1331 = vpack.c.b16 %v1319, %v1318
    %v1332 = vpack.c.b16 %v1321, %v1320
    %v1333 = vpack.c.b16 %v1323, %v1322
    %v1334 = vpack.c.b16 %v1325, %v1324
    %v1335 = vpack.c.b16 %v1327, %v1326
    %1344 = vmatprep.subr.bf16.mxu0 0
    %1345 = vmatpush1.bf16.msra.mxu0 %v1328
    %1346 = vmatprep.subr.bf16.mxu0 0
    %1347 = vmatpush1.bf16.msra.mxu0 %v1329
    %1348 = vmatprep.subr.bf16.mxu0 0
    %1349 = vmatpush1.bf16.msra.mxu0 %v1330
    %1350 = vmatprep.subr.bf16.mxu0 0
    %1351 = vmatpush1.bf16.msra.mxu0 %v1331
    %1352 = vmatprep.subr.bf16.mxu0 0
    %1353 = vmatpush1.bf16.msra.mxu0 %v1332
    %1354 = vmatprep.subr.bf16.mxu0 0
    %1355 = vmatpush1.bf16.msra.mxu0 %v1333
    %1356 = vmatprep.subr.bf16.mxu0 0
    %1357 = vmatpush1.bf16.msra.mxu0 %v1334
    %1358 = vmatprep.subr.bf16.mxu0 0
    %1359 = vmatpush1.bf16.msra.mxu0 %v1335
    %1360 = vmatprep.subr.bf16.mxu0 0
    %1361 = vmatpush1.bf16.msra.mxu0 0
    %1362 = vmatprep.subr.bf16.mxu0 0
    %1363 = vmatpush1.bf16.msra.mxu0 0
    %1364 = vmatprep.subr.bf16.mxu0 0
    %1365 = vmatpush1.bf16.msra.mxu0 0
    %1366 = vmatprep.subr.bf16.mxu0 0
    %1367 = vmatpush1.bf16.msra.mxu0 0
    %1368 = vmatprep.subr.bf16.mxu0 0
    %1369 = vmatpush1.bf16.msra.mxu0 0
    %1370 = vmatprep.subr.bf16.mxu0 0
    %1371 = vmatpush1.bf16.msra.mxu0 0
    %1372 = vmatprep.subr.bf16.mxu0 0
    %1373 = vmatpush1.bf16.msra.mxu0 0
    %1374 = vmatprep.subr.bf16.mxu0 0
    %1375 = vmatpush1.bf16.msra.mxu0 0
    %1376 = vmatprep.mubr.bf16.mxu0 0
    %1377 = vmatmul.mubr.bf16.gmra.mrb[0].mxu0 %v1272
    %v1378 = vpop.f32.mrb[0].mxu0
    %v1379 = vadd.f32 %v1294, %v1378
    %v1380 = vpop.f32.mrb[0].mxu0
    %v1381 = vpop.f32.mrb[0].mxu0
    %v1382 = vadd.f32 %v1294, %v1381
    %v1383 = vpop.f32.mrb[0].mxu0
    %1384 = vdwg.mxu0
    %v1385 = vadd.f32 %v1144, %v1379
    %v1386 = vadd.f32 %v1145, %v1382
    %1387 = vst.msk [vmem:[#allocation2] sm:$0xff] %vm50, %v1385
    %1388 = vst.msk [vmem:[#allocation2 + $0x8] sm:$0xff] %vm50, %v1386
    // Predicated region
    $region54: #{tpu_custom_call.1} parent=1 // pred_check
      _
    $region55: #{tpu_custom_call.1} parent=1 // pred_check_branch
      %1390 = sbr.rel (0) target = $region57
    $region56: #{tpu_custom_call.1} parent=1 // pred_region
      %s1392 = ssub.s32 256, 256
      %1393 = vsyncadd [#allocation3], %s1392
      %s1394 = sshll.u32 [#allocation2], 4
      %s1395 = int_to_ptr.vmem [resolvable:$true] %s1394
      %1400 = dma.vmem_to_hbm [thread:$0]  %s1395, 256, %s13, [#allocation3], 128, 128, 8
    $region57: #{tpu_custom_call.1} parent=1 // pred_fallthru
      _
    // Predicated region
    $region58: #{tpu_custom_call.1} parent=1 // pred_check
      _
    $region59: #{tpu_custom_call.1} parent=1 // pred_check_branch
      %1402 = sbr.rel (0) target = $region61
    $region60: #{tpu_custom_call.1} parent=1 // pred_region
      %1403 = dma.done [#allocation3], 256
    $region61: #{tpu_custom_call.1} parent=1 // pred_fallthru
      _
    %1404 = vsyncpa [#allocation3], 1

</llo_original>
